<compile_context>
chip_gen: v6e
topology: v6e:2x2x1
jax: 0.10.0
libtpu: 0.0.40
codegen_flags: <defaults>
</compile_context>

<pallas_src>
import functools

import jax
import jax.numpy as jnp
from jax.experimental import pallas as pl
from jax.experimental.pallas import tpu as pltpu

LANE = 128


def _round_up(x, m):
    return (x + m - 1) // m * m


def _pick_row_tile(num_rows, lane_width, sublane, target_bytes, min_steps=8):
    """Row tile: ~target_bytes of fp32 payload, sublane-aligned, with a
    reasonably large (and preferably even) grid-step count so v7x's two
    TensorCores both get work.  A block equal to the full dim is always
    layout-legal, so tiny inputs fall back to a single full-extent block."""
    if num_rows <= sublane:
        return num_rows
    # Byte-target tile.
    tr = max(sublane, (target_bytes // (lane_width * 4)) // sublane * sublane)
    # Keep enough grid steps for the pipeline / both v7x TCs.
    max_steps = num_rows // sublane
    want = min(min_steps, max_steps)
    if want > 1 and want % 2 == 1:
        want = want + 1 if want + 1 <= max_steps else want - 1
    tr = min(tr, _round_up(pl.cdiv(num_rows, max(want, 1)), sublane))
    if tr >= num_rows:
        return num_rows                       # single full-extent block
    # Nudge to an even step count when cheap.
    steps = pl.cdiv(num_rows, tr)
    if steps > 1 and steps % 2 == 1:
        alt = _round_up(pl.cdiv(num_rows, steps + 1), sublane)
        if alt >= sublane and pl.cdiv(num_rows, alt) % 2 == 0:
            tr = alt
    return tr


def _compiler_params(io_block_bytes, f32_block_bytes):
    # 2x double-buffered input + output blocks, in-kernel fp32 temporaries,
    # plus headroom for the small resident operands.  48 MiB stays inside
    # v7x's 64 MiB VMEM while letting v5e/v6e (128 MiB) run ~4 MiB blocks.
    need = 4 * io_block_bytes + 4 * f32_block_bytes + (4 << 20)
    return pltpu.CompilerParams(
        dimension_semantics=("parallel",),
        vmem_limit_bytes=int(min(max(need, 16 << 20), 48 << 20)),
    )


def _matmul_precision():
    # HIGHEST (6 bf16 passes, f32-exact) is free headroom on v6e/v7x where this
    # kernel is HBM-bound; on v5e it would make the packed path MXU-bound, and
    # HIGH (3 passes; bd is exact in bf16) keeps it on the HBM roofline.
    try:
        kind = jax.devices()[0].device_kind.lower()
    except Exception:
        kind = ""
    return jax.lax.Precision.HIGH if "v5" in kind else jax.lax.Precision.HIGHEST


# ---------------------------------------------------------------------------
# Kernels
# ---------------------------------------------------------------------------

def _layernorm_rows_kernel(x_ref, g_ref, b_ref, o_ref, *, epsilon):
    """Generic path: one normalization group per (already lane-dense) row."""
    x = x_ref[...].astype(jnp.float32)
    mean = jnp.mean(x, axis=-1, keepdims=True)
    xc = x - mean
    var = jnp.mean(xc * xc, axis=-1, keepdims=True)          # biased (unbiased=False)
    inv = jax.lax.rsqrt(var + epsilon)
    y = xc * inv * g_ref[...].astype(jnp.float32) + b_ref[...].astype(jnp.float32)
    o_ref[...] = y.astype(o_ref.dtype)


def _layernorm_packed_kernel(x_ref, bd_ref, g_ref, b_ref, o_ref, *, inv_c, epsilon,
                             precision):
    """Lane-dense path for C < 128: P = 128 // C rows packed per 128-lane row.

    Segmented (per C-lane group) sums run on the otherwise-idle MXU via a
    128x128 block-diagonal ones matrix; results come back already broadcast
    across each segment, so the rest is elementwise VPU work and every store
    is a full-lane unmasked vst.
    """
    x = x_ref[...].astype(jnp.float32)
    bd = bd_ref[...]
    seg_sum = jnp.dot(x, bd, preferred_element_type=jnp.float32, precision=precision)
    mean = seg_sum * inv_c
    xc = x - mean
    var = jnp.dot(xc * xc, bd, preferred_element_type=jnp.float32,
                  precision=precision) * inv_c
    inv = jax.lax.rsqrt(var + epsilon)
    y = xc * inv * g_ref[...].astype(jnp.float32) + b_ref[...].astype(jnp.float32)
    o_ref[...] = y.astype(o_ref.dtype)


# ---------------------------------------------------------------------------
# Wrappers
# ---------------------------------------------------------------------------

def _layer_norm_rows(x2d, g, b, epsilon, target_block_bytes):
    R, C = x2d.shape
    dtype = x2d.dtype
    itemsize = jnp.dtype(dtype).itemsize
    sublane = 16 if itemsize < 4 else 8

    tr = _pick_row_tile(R, C, sublane, target_block_bytes)
    grid = (pl.cdiv(R, tr),)                      # ragged last block handled by Pallas

    return pl.pallas_call(
        functools.partial(_layernorm_rows_kernel, epsilon=epsilon),
        out_shape=jax.ShapeDtypeStruct((R, C), dtype),
        grid_spec=pltpu.PrefetchScalarGridSpec(
            num_scalar_prefetch=0,
            grid=grid,
            in_specs=[
                pl.BlockSpec((tr, C), lambda i: (i, 0)),   # x rows tile
                pl.BlockSpec((1, C), lambda i: (0, 0)),    # gamma (resident)
                pl.BlockSpec((1, C), lambda i: (0, 0)),    # beta  (resident)
            ],
            out_specs=pl.BlockSpec((tr, C), lambda i: (i, 0)),
        ),
        compiler_params=_compiler_params(tr * C * itemsize, tr * C * 4),
    )(x2d, g, b)


def _layer_norm_packed(x2d, g, b, epsilon, target_block_bytes):
    R, C = x2d.shape
    P = LANE // C
    dtype = x2d.dtype
    itemsize = jnp.dtype(dtype).itemsize
    sublane = 16 if itemsize < 4 else 8

    # Pad only when required for the free bit-compatible reshape to (rows, 128);
    # for typical N*H*W this is a no-op and no extra HBM traffic is generated.
    R_pad = _round_up(R, P)
    xp = jnp.pad(x2d, ((0, R_pad - R), (0, 0))) if R_pad != R else x2d
    rows = R_pad // P
    xp = xp.reshape(rows, LANE)

    g_t = jnp.tile(g, (1, P))                     # lane k -> channel k % C
    b_t = jnp.tile(b, (1, P))

    # 128x128 block-diagonal ones matrix for segmented sums on the MXU.
    li = jax.lax.broadcasted_iota(jnp.int32, (LANE, LANE), 0) // C
    lj = jax.lax.broadcasted_iota(jnp.int32, (LANE, LANE), 1) // C
    bd = (li == lj).astype(jnp.float32)

    tr = _pick_row_tile(rows, LANE, sublane, target_block_bytes)
    grid = (pl.cdiv(rows, tr),)                   # ragged last block handled by Pallas

    out = pl.pallas_call(
        functools.partial(_layernorm_packed_kernel, inv_c=1.0 / C, epsilon=epsilon,
                          precision=_matmul_precision()),
        out_shape=jax.ShapeDtypeStruct((rows, LANE), dtype),
        grid_spec=pltpu.PrefetchScalarGridSpec(
            num_scalar_prefetch=0,
            grid=grid,
            in_specs=[
                pl.BlockSpec((tr, LANE), lambda i: (i, 0)),    # packed x tile
                pl.BlockSpec((LANE, LANE), lambda i: (0, 0)),  # block-diag ones (resident)
                pl.BlockSpec((1, LANE), lambda i: (0, 0)),     # gamma tiled (resident)
                pl.BlockSpec((1, LANE), lambda i: (0, 0)),     # beta tiled  (resident)
            ],
            out_specs=pl.BlockSpec((tr, LANE), lambda i: (i, 0)),
        ),
        compiler_params=_compiler_params(tr * LANE * itemsize, tr * LANE * 4),
    )(xp, bd, g_t, b_t)

    out = out.reshape(R_pad, C)
    return out[:R] if R_pad != R else out


def layer_norm_nhwc(x, gamma, beta, *, epsilon=1e-7, target_block_bytes=4 << 20):
    """x: (N, H, W, C) NHWC.  gamma: (1,1,1,C).  beta: (C,)."""
    N, H, W, C = x.shape
    R = N * H * W
    x2d = x.reshape(R, C)
    g = gamma.reshape(1, C)
    b = beta.reshape(1, C)

    if C < LANE and LANE % C == 0:
        out = _layer_norm_packed(x2d, g, b, epsilon, target_block_bytes)
    else:
        out = _layer_norm_rows(x2d, g, b, epsilon, target_block_bytes)
    return out.reshape(N, H, W, C)


def _reference(x, gamma, beta, epsilon=1e-7):
    xf = x.astype(jnp.float32)
    mean = jnp.mean(xf, axis=-1, keepdims=True)
    var = jnp.mean((xf - mean) ** 2, axis=-1, keepdims=True)
    y = (xf - mean) / jnp.sqrt(var + epsilon)
    C = x.shape[-1]
    return (y * gamma.reshape(1, 1, 1, C) + beta.reshape(1, 1, 1, C)).astype(x.dtype)


if __name__ == "__main__":
    key = jax.random.PRNGKey(0)

    # Small NHWC input consistent with the module (out_dim == C, axis == -1):
    # exercises the lane-dense packed path (C=32 < 128), no padding needed.
    N, H, W, C = 2, 16, 16, 32
    x = jax.random.normal(key, (N, H, W, C), dtype=jnp.float32)
    gamma = jnp.ones((1, 1, 1, C), dtype=jnp.float32)   # module init: ones
    beta = jnp.zeros((C,), dtype=jnp.float32)           # module init: zeros

    out = jax.block_until_ready(layer_norm_nhwc(x, gamma, beta, epsilon=1e-7))
    ref = _reference(x, gamma, beta, epsilon=1e-7)
    assert out.shape == x.shape and out.dtype == x.dtype
    assert jnp.allclose(out, ref, atol=1e-5, rtol=1e-5)

    # Generic (C >= 128) path with R % tile != 0: exercises the ragged last
    # block (masked stores, no host-side pad/slice).
    N2, H2, W2, C2 = 1, 5, 5, 128
    x2 = jax.random.normal(jax.random.PRNGKey(1), (N2, H2, W2, C2), dtype=jnp.float32)
    g2 = jax.random.normal(jax.random.PRNGKey(2), (1, 1, 1, C2), dtype=jnp.float32)
    b2 = jax.random.normal(jax.random.PRNGKey(3), (C2,), dtype=jnp.float32)
    out2 = jax.block_until_ready(layer_norm_nhwc(x2, g2, b2, epsilon=1e-7))
    ref2 = _reference(x2, g2, b2, epsilon=1e-7)
    assert jnp.allclose(out2, ref2, atol=1e-5, rtol=1e-5)

    # Packed path with R % P != 0 (pad-to-P fallback) and a full-extent block.
    N3, H3, W3, C3 = 1, 3, 7, 32
    x3 = jax.random.normal(jax.random.PRNGKey(4), (N3, H3, W3, C3), dtype=jnp.float32)
    g3 = jax.random.normal(jax.random.PRNGKey(5), (1, 1, 1, C3), dtype=jnp.float32)
    b3 = jax.random.normal(jax.random.PRNGKey(6), (C3,), dtype=jnp.float32)
    out3 = jax.block_until_ready(layer_norm_nhwc(x3, g3, b3, epsilon=1e-7))
    ref3 = _reference(x3, g3, b3, epsilon=1e-7)
    assert jnp.allclose(out3, ref3, atol=1e-5, rtol=1e-5)

    print("KERNEL_OK")
</pallas_src>

<mosaic_0001>
module attributes {stable_mosaic.version = 11 : i64} {
  func.func @_layernorm_packed_kernel(%arg0: i32, %arg1: memref<16x128xf32, #tpu.memory_space<vmem>>, %arg2: memref<128x128xf32, #tpu.memory_space<vmem>>, %arg3: memref<1x128xf32, #tpu.memory_space<vmem>>, %arg4: memref<1x128xf32, #tpu.memory_space<vmem>>, %arg5: memref<16x128xf32, #tpu.memory_space<vmem>>) attributes {dimension_semantics = [#tpu.dimension_semantics<parallel>], iteration_bounds = array<i64: 8>, scalar_prefetch = 0 : i64, scratch_operands = 0 : i64, tpu.core_type = #tpu.core_type<tc>, window_params = [{transform_indices = @transform_0, window_bounds = array<i64: 16, 128>}, {pipeline_mode = #tpu.pipeline_mode<synchronous>, transform_indices = @transform_1, window_bounds = array<i64: 128, 128>}, {pipeline_mode = #tpu.pipeline_mode<synchronous>, transform_indices = @transform_2, window_bounds = array<i64: 1, 128>}, {pipeline_mode = #tpu.pipeline_mode<synchronous>, transform_indices = @transform_3, window_bounds = array<i64: 1, 128>}, {transform_indices = @transform_4, window_bounds = array<i64: 16, 128>}]} {
    %c0 = arith.constant 0 : index
    %c0_0 = arith.constant 0 : index
    %0 = vector.load %arg1[%c0, %c0_0] : memref<16x128xf32, #tpu.memory_space<vmem>>, vector<16x128xf32>
    %c0_1 = arith.constant 0 : index
    %c0_2 = arith.constant 0 : index
    %1 = vector.load %arg2[%c0_1, %c0_2] : memref<128x128xf32, #tpu.memory_space<vmem>>, vector<128x128xf32>
    %cst = arith.constant dense<0.000000e+00> : vector<16x128xf32>
    %2 = tpu.matmul %0, %1, %cst {dimension_numbers = #tpu.dot_dimension_numbers<[1], [0], [0], [1], [0, 0, 1, 1], [], []>, precision = #tpu.contract_precision<fp32>} : vector<16x128xf32>, vector<128x128xf32>, vector<16x128xf32> -> vector<16x128xf32>
    %cst_3 = arith.constant 3.125000e-02 : f32
    %3 = vector.broadcast %cst_3 : f32 to vector<16x128xf32>
    %4 = arith.mulf %2, %3 : vector<16x128xf32>
    %5 = arith.subf %0, %4 : vector<16x128xf32>
    %6 = arith.mulf %5, %5 : vector<16x128xf32>
    %cst_4 = arith.constant dense<0.000000e+00> : vector<16x128xf32>
    %7 = tpu.matmul %6, %1, %cst_4 {dimension_numbers = #tpu.dot_dimension_numbers<[1], [0], [0], [1], [0, 0, 1, 1], [], []>, precision = #tpu.contract_precision<fp32>} : vector<16x128xf32>, vector<128x128xf32>, vector<16x128xf32> -> vector<16x128xf32>
    %cst_5 = arith.constant 3.125000e-02 : f32
    %8 = vector.broadcast %cst_5 : f32 to vector<16x128xf32>
    %9 = arith.mulf %7, %8 : vector<16x128xf32>
    %cst_6 = arith.constant 1.000000e-07 : f32
    %10 = vector.broadcast %cst_6 : f32 to vector<16x128xf32>
    %11 = arith.addf %9, %10 : vector<16x128xf32>
    %12 = math.rsqrt %11 : vector<16x128xf32>
    %13 = arith.mulf %5, %12 : vector<16x128xf32>
    %c0_7 = arith.constant 0 : index
    %c0_8 = arith.constant 0 : index
    %14 = vector.load %arg3[%c0_7, %c0_8] : memref<1x128xf32, #tpu.memory_space<vmem>>, vector<1x128xf32>
    %15 = vector.broadcast %14 : vector<1x128xf32> to vector<16x128xf32>
    %16 = arith.mulf %13, %15 : vector<16x128xf32>
    %c0_9 = arith.constant 0 : index
    %c0_10 = arith.constant 0 : index
    %17 = vector.load %arg4[%c0_9, %c0_10] : memref<1x128xf32, #tpu.memory_space<vmem>>, vector<1x128xf32>
    %18 = vector.broadcast %17 : vector<1x128xf32> to vector<16x128xf32>
    %19 = arith.addf %16, %18 : vector<16x128xf32>
    %c0_11 = arith.constant 0 : index
    %c0_12 = arith.constant 0 : index
    %20 = vector.load %arg5[%c0_11, %c0_12] : memref<16x128xf32, #tpu.memory_space<vmem>>, vector<16x128xf32>
    tpu.vector_store %arg5[%c0_11, %c0_12], %19 {strides = array<i32>} : memref<16x128xf32, #tpu.memory_space<vmem>>, vector<16x128xf32>,
    return
  }
  func.func @transform_0(%arg0: i32) -> (i32, i32) {
    %c0_i32 = arith.constant 0 : i32
    %c0_i32_0 = arith.constant 0 : i32
    return %arg0, %c0_i32 : i32, i32
  }
  func.func @transform_1(%arg0: i32) -> (i32, i32) {
    %c0_i32 = arith.constant 0 : i32
    %c0_i32_0 = arith.constant 0 : i32
    %c0_i32_1 = arith.constant 0 : i32
    return %c0_i32, %c0_i32_0 : i32, i32
  }
  func.func @transform_2(%arg0: i32) -> (i32, i32) {
    %c0_i32 = arith.constant 0 : i32
    %c0_i32_0 = arith.constant 0 : i32
    %c0_i32_1 = arith.constant 0 : i32
    return %c0_i32, %c0_i32_0 : i32, i32
  }
  func.func @transform_3(%arg0: i32) -> (i32, i32) {
    %c0_i32 = arith.constant 0 : i32
    %c0_i32_0 = arith.constant 0 : i32
    %c0_i32_1 = arith.constant 0 : i32
    return %c0_i32, %c0_i32_0 : i32, i32
  }
  func.func @transform_4(%arg0: i32) -> (i32, i32) {
    %c0_i32 = arith.constant 0 : i32
    %c0_i32_0 = arith.constant 0 : i32
    return %arg0, %c0_i32 : i32, i32
  }
}

</mosaic_0001>

<llo_original>
// kernel: tpu_custom_call.1
$region0: #{tpu_custom_call.1}
  #allocation0 [shape = 'u32[]', space=smem, size = 0x4, offset = 0x4, fixed_abs, tag = 'smem constant byte address 0x4 - core index']
  #allocation1 [shape = 'u32[144,128]{1,0:T(1,128)}', space=vmem, size = 0x12000, scoped, tag = 'internal scratch']
  %s0 = inlined_call_operand.hbm [shape: f32[128,128], index: 0, kind: input, shape index: {}]
  %s1 = inlined_call_operand.hbm [shape: f32[128,128], index: 1, kind: input, shape index: {}]
  %s2 = inlined_call_operand.vmem [shape: f32[1,128], index: 2, kind: input, shape index: {}]
  %s3 = inlined_call_operand.vmem [shape: f32[1,128], index: 3, kind: input, shape index: {}]
  %s4 = inlined_call_operand.hbm [shape: f32[128,128], index: 4, kind: output, shape index: {}]
  %s5 = sld [smem:[#allocation0]]
  $region57: #{tpu_custom_call.1} parent=0
    _
  %s7 = ssub.s32 1, %s5
  %s8 = scalar_select 0, %s7, %s5
  $region1: #{tpu_custom_call.1} parent=0
    #allocation2 [shape = 'u8[16384]{0}', space=vmem, size = 0x4000, scoped, tag = 'input window, operand 0']
    #allocation3 [shape = 's32[2]{0}', space=sflag, size = 0x8, scoped, tag = 'scoped memory for tpu_custom_call.1']
    #allocation4 [shape = 's32[2]{0}', space=sflag, size = 0x8, scoped, tag = 'scoped memory for tpu_custom_call.1']
    #allocation5 [shape = 'u8[65536]{0}', space=vmem, size = 0x10000, scoped, tag = 'input window, operand 1, single buffered']
    #allocation6 [shape = 's32[1]{0}', space=sflag, size = 0x4, scoped, tag = 'scoped memory for tpu_custom_call.1']
    #allocation7 [shape = 'u8[16384]{0}', space=vmem, size = 0x4000, scoped, tag = 'output window, operand 0']
    %9 = vsyncpa [#allocation3], 0
    %s10 = scalar_lea.sflag [#allocation3], 1
    %11 = vsyncpa %s10, 0
    %12 = vsyncpa [#allocation6], 0
    %13 = vsyncpa [#allocation4], 0
    %s14 = scalar_lea.sflag [#allocation4], 1
    %15 = vsyncpa %s14, 0
    loop: start=0, step=1, limit=10
    $region2: #{tpu_custom_call.1} parent=1 // loop_pre_header
      _
    $region3: #{tpu_custom_call.1} parent=1 // loop_header
      %s17 = sphi 0, %s21
      %p18 = scmp.ge.s32.totalorder %s17, 10
      %s27 = sphi 0, %s29
      %s30 = sphi 0, %s27
      %s31 = sphi 0, %s30
      %s47 = sphi 0, %s31
      %s51 = sphi 0, %s51
      %s53 = sphi 0, %s51
      %s54 = sphi 0, %s53
      %s68 = sphi 0, %s54
      %s72 = sphi 0, %s72
      %s74 = sphi 0, %s72
      %s75 = sphi 0, %s74
      %s89 = sphi 0, %s75
      %s93 = sphi 0, %s93
      %s95 = sphi 0, %s93
      %s96 = sphi 0, %s95
      %s110 = sphi 0, %s96
      %s116 = sphi 0, %s118
      %s119 = sphi 0, %s116
      %s120 = sphi 0, %s119
      %s136 = sphi 0, %s120
    $region4: #{tpu_custom_call.1} parent=1 // loop_header_branch
      %20 = sbr.rel (%p18) target = $region8
    $region5: #{tpu_custom_call.1} parent=1 // loop_body
      %s22 = ssub.s32 %s17, 1
      %s23 = ssub.s32 %s17, 2
      %s24 = sadd.s32 %s17, 1
      %s25 = ssub.s32 %s17, %s24
      %p26 = scmp.eq.s32.totalorder %s25, 0
      %s28 = sadd.s32 %s27, 1
      %s29 = scalar_select %p26, %s27, %s28
      %p32 = pneg %p26
      %p33 = scmp.eq.s32.totalorder %s17, 7
      %p34 = por %p32, %p33
      %p35 = scmp.ne.s32.totalorder %s27, %s30
      %p36 = scmp.eq.s32.totalorder %s17, 0
      %p37 = por %p35, %p36
      %p38 = scmp.ne.s32.totalorder %s27, %s30
      %p39 = scmp.eq.s32.totalorder %s22, 7
      %p40 = por %p38, %p39
      %p41 = scmp.ne.s32.totalorder %s30, %s31
      %p42 = scmp.eq.s32.totalorder %s22, 0
      %p43 = por %p41, %p42
      %p44 = scmp.ne.s32.totalorder %s30, %s31
      %p45 = scmp.eq.s32.totalorder %s23, 7
      %p46 = por %p44, %p45
      %p48 = scmp.ne.s32.totalorder %s31, %s47
      %p49 = scmp.eq.s32.totalorder %s23, 0
      %p50 = por %p48, %p49
      %s52 = sadd.s32 %s51, 1
      %p55 = scmp.eq.s32.totalorder %s17, 7
      %p56 = scmp.ne.s32.totalorder %s51, %s53
      %p57 = scmp.eq.s32.totalorder %s17, 0
      %p58 = por %p56, %p57
      %p59 = scmp.ne.s32.totalorder %s51, %s53
      %p60 = scmp.eq.s32.totalorder %s22, 7
      %p61 = por %p59, %p60
      %p62 = scmp.ne.s32.totalorder %s53, %s54
      %p63 = scmp.eq.s32.totalorder %s22, 0
      %p64 = por %p62, %p63
      %p65 = scmp.ne.s32.totalorder %s53, %s54
      %p66 = scmp.eq.s32.totalorder %s23, 7
      %p67 = por %p65, %p66
      %p69 = scmp.ne.s32.totalorder %s54, %s68
      %p70 = scmp.eq.s32.totalorder %s23, 0
      %p71 = por %p69, %p70
      %s73 = sadd.s32 %s72, 1
      %p76 = scmp.eq.s32.totalorder %s17, 7
      %p77 = scmp.ne.s32.totalorder %s72, %s74
      %p78 = scmp.eq.s32.totalorder %s17, 0
      %p79 = por %p77, %p78
      %p80 = scmp.ne.s32.totalorder %s72, %s74
      %p81 = scmp.eq.s32.totalorder %s22, 7
      %p82 = por %p80, %p81
      %p83 = scmp.ne.s32.totalorder %s74, %s75
      %p84 = scmp.eq.s32.totalorder %s22, 0
      %p85 = por %p83, %p84
      %p86 = scmp.ne.s32.totalorder %s74, %s75
      %p87 = scmp.eq.s32.totalorder %s23, 7
      %p88 = por %p86, %p87
      %p90 = scmp.ne.s32.totalorder %s75, %s89
      %p91 = scmp.eq.s32.totalorder %s23, 0
      %p92 = por %p90, %p91
      %s94 = sadd.s32 %s93, 1
      %p97 = scmp.eq.s32.totalorder %s17, 7
      %p98 = scmp.ne.s32.totalorder %s93, %s95
      %p99 = scmp.eq.s32.totalorder %s17, 0
      %p100 = por %p98, %p99
      %p101 = scmp.ne.s32.totalorder %s93, %s95
      %p102 = scmp.eq.s32.totalorder %s22, 7
      %p103 = por %p101, %p102
      %p104 = scmp.ne.s32.totalorder %s95, %s96
      %p105 = scmp.eq.s32.totalorder %s22, 0
      %p106 = por %p104, %p105
      %p107 = scmp.ne.s32.totalorder %s95, %s96
      %p108 = scmp.eq.s32.totalorder %s23, 7
      %p109 = por %p107, %p108
      %p111 = scmp.ne.s32.totalorder %s96, %s110
      %p112 = scmp.eq.s32.totalorder %s23, 0
      %p113 = por %p111, %p112
      %s114 = ssub.s32 %s17, %s24
      %p115 = scmp.eq.s32.totalorder %s114, 0
      %s117 = sadd.s32 %s116, 1
      %s118 = scalar_select %p115, %s116, %s117
      %p121 = pneg %p115
      %p122 = scmp.eq.s32.totalorder %s17, 7
      %p123 = por %p121, %p122
      %p124 = scmp.ne.s32.totalorder %s116, %s119
      %p125 = scmp.eq.s32.totalorder %s17, 0
      %p126 = por %p124, %p125
      %p127 = scmp.ne.s32.totalorder %s116, %s119
      %p128 = scmp.eq.s32.totalorder %s22, 7
      %p129 = por %p127, %p128
      %p130 = scmp.ne.s32.totalorder %s119, %s120
      %p131 = scmp.eq.s32.totalorder %s22, 0
      %p132 = por %p130, %p131
      %p133 = scmp.ne.s32.totalorder %s119, %s120
      %p134 = scmp.eq.s32.totalorder %s23, 7
      %p135 = por %p133, %p134
      %p137 = scmp.ne.s32.totalorder %s120, %s136
      %p138 = scmp.eq.s32.totalorder %s23, 0
      %p139 = por %p137, %p138
      %p140 = scmp.le.s32.totalorder 1, %s17
      %p141 = scmp.lt.s32.totalorder %s17, 9
      %p142 = pnand %p140, %p141
      %p143 = pneg %p142
      // Predicated region
      $region9: #{tpu_custom_call.1} parent=5 // pred_check
        _
      $region10: #{tpu_custom_call.1} parent=5 // pred_check_branch
        %145 = sbr.rel (%p142) target = $region12
      $region11: #{tpu_custom_call.1} parent=5 // pred_region
        %s146 = ssub.s32 %s17, 1
        // Predicated region
        $region13: #{tpu_custom_call.1} parent=11 // pred_check
          %p147 = pneg %p64
        $region14: #{tpu_custom_call.1} parent=11 // pred_check_branch
          %149 = sbr.rel (%p147) target = $region16
        $region15: #{tpu_custom_call.1} parent=11 // pred_region
          %s151 = ssub.s32 2048, 2048
          %152 = vsyncadd [#allocation6], %s151
          %s153 = sshll.u32 [#allocation5], 4
          %s154 = int_to_ptr.vmem [resolvable:$true] %s153
          %159 = dma.hbm_to_vmem [thread:$0]  %s1, 2048, %s154, [#allocation6], 128, 128, 8
        $region16: #{tpu_custom_call.1} parent=11 // pred_fallthru
          _
        // Predicated region
        $region17: #{tpu_custom_call.1} parent=11 // pred_check
          %p160 = pneg %p85
        $region18: #{tpu_custom_call.1} parent=11 // pred_check_branch
          %162 = sbr.rel (%p160) target = $region20
        $region19: #{tpu_custom_call.1} parent=11 // pred_region
          _
        $region20: #{tpu_custom_call.1} parent=11 // pred_fallthru
          _
        // Predicated region
        $region21: #{tpu_custom_call.1} parent=11 // pred_check
          %p163 = pneg %p106
        $region22: #{tpu_custom_call.1} parent=11 // pred_check_branch
          %165 = sbr.rel (%p163) target = $region24
        $region23: #{tpu_custom_call.1} parent=11 // pred_region
          _
        $region24: #{tpu_custom_call.1} parent=11 // pred_fallthru
          _
      $region12: #{tpu_custom_call.1} parent=5 // pred_fallthru
        _
      %p166 = scmp.lt.s32.totalorder %s17, 8
      // Predicated region
      $region25: #{tpu_custom_call.1} parent=5 // pred_check
        %p167 = pneg %p166
      $region26: #{tpu_custom_call.1} parent=5 // pred_check_branch
        %169 = sbr.rel (%p167) target = $region28
      $region27: #{tpu_custom_call.1} parent=5 // pred_region
        // Predicated region
        $region29: #{tpu_custom_call.1} parent=27 // pred_check
          %p170 = pneg %p37
        $region30: #{tpu_custom_call.1} parent=27 // pred_check_branch
          %172 = sbr.rel (%p170) target = $region32
        $region31: #{tpu_custom_call.1} parent=27 // pred_region
          %s173 = sand.u32 %s27, 1
          %s174 = scalar_lea.sflag [#allocation3], %s173
          %s175 = sand.u32 %s27, 1
          %s176 = smul.addr %s175, 16
          %s177 = scalar_lea.vmem [#allocation2], %s176
          %s178 = smul.u32 2, %s17
          %s180 = ssub.s32 256, 256
          %181 = vsyncadd %s174, %s180
          %s182 = smul.addr %s178, 128
          %s183 = scalar_lea.hbm %s0, %s182
          %s184 = sshll.u32 %s177, 4
          %s185 = int_to_ptr.vmem [resolvable:$true] %s184
          %190 = dma.hbm_to_vmem [thread:$0]  %s183, 256, %s185, %s174, 128, 128, 8
        $region32: #{tpu_custom_call.1} parent=27 // pred_fallthru
          _
      $region28: #{tpu_custom_call.1} parent=5 // pred_fallthru
        _
      %p191 = scmp.le.s32.totalorder 1, %s17
      %p192 = scmp.lt.s32.totalorder %s17, 9
      %p193 = pnand %p191, %p192
      %p194 = pneg %p193
      // Predicated region
      $region33: #{tpu_custom_call.1} parent=5 // pred_check
        _
      $region34: #{tpu_custom_call.1} parent=5 // pred_check_branch
        %196 = sbr.rel (%p193) target = $region36
      $region35: #{tpu_custom_call.1} parent=5 // pred_region
        %s197 = ssub.s32 %s17, 1
        %s198 = sand.u32 %s30, 1
        %s199 = scalar_lea.sflag [#allocation3], %s198
        %s200 = sand.u32 %s30, 1
        %s201 = smul.addr %s200, 16
        %s202 = scalar_lea.vmem [#allocation2], %s201
        // Predicated region
        $region37: #{tpu_custom_call.1} parent=35 // pred_check
          %p203 = pneg %p43
        $region38: #{tpu_custom_call.1} parent=35 // pred_check_branch
          %205 = sbr.rel (%p203) target = $region40
        $region39: #{tpu_custom_call.1} parent=35 // pred_region
          %206 = dma.done %s199, 256
        $region40: #{tpu_custom_call.1} parent=35 // pred_fallthru
          _
        // Predicated region
        $region41: #{tpu_custom_call.1} parent=35 // pred_check
          %p207 = pneg %p64
        $region42: #{tpu_custom_call.1} parent=35 // pred_check_branch
          %209 = sbr.rel (%p207) target = $region44
        $region43: #{tpu_custom_call.1} parent=35 // pred_region
          %210 = dma.done [#allocation6], 2048
        $region44: #{tpu_custom_call.1} parent=35 // pred_fallthru
          _
        %s211 = sand.u32 %s30, 1
        %s212 = scalar_lea.sflag [#allocation3], %s211
        %s213 = sand.u32 %s30, 1
        %s214 = smul.addr %s213, 16
        %s215 = scalar_lea.vmem [#allocation2], %s214
        %p216 = pneg %p43
        %p217 = pneg %p40
        %p218 = pneg %p64
        %p219 = pneg %p61
        %p220 = pneg %p85
        %p221 = pneg %p82
        %p222 = pneg %p106
        %p223 = pneg %p103
        %p224 = pneg %p132
        %p225 = pneg %p129
        %s226 = sand.u32 %s119, 1
        %s227 = scalar_lea.sflag [#allocation4], %s226
        %s228 = sand.u32 %s119, 1
        %s229 = smul.addr %s228, 16
        %s230 = scalar_lea.vmem [#allocation7], %s229
        %s231 = smul.u32 2, %s22
        %s232 = smul.u32 2, %s22
        %v233 = vld [vmem:[%s202] sm:$0xff]
        %v234 = vld [vmem:[%s202 + $0x8] sm:$0xff]
        %v235 = vld [vmem:[#allocation5] sm:$0xff]
        %v236 = vld [vmem:[#allocation5 + $0x8] sm:$0xff]
        %v237 = vld [vmem:[#allocation5 + $0x10] sm:$0xff]
        %v238 = vld [vmem:[#allocation5 + $0x18] sm:$0xff]
        %v239 = vld [vmem:[#allocation5 + $0x20] sm:$0xff]
        %v240 = vld [vmem:[#allocation5 + $0x28] sm:$0xff]
        %v241 = vld [vmem:[#allocation5 + $0x30] sm:$0xff]
        %v242 = vld [vmem:[#allocation5 + $0x38] sm:$0xff]
        %v243 = vld [vmem:[#allocation5 + $0x40] sm:$0xff]
        %v244 = vld [vmem:[#allocation5 + $0x48] sm:$0xff]
        %v245 = vld [vmem:[#allocation5 + $0x50] sm:$0xff]
        %v246 = vld [vmem:[#allocation5 + $0x58] sm:$0xff]
        %v247 = vld [vmem:[#allocation5 + $0x60] sm:$0xff]
        %v248 = vld [vmem:[#allocation5 + $0x68] sm:$0xff]
        %v249 = vld [vmem:[#allocation5 + $0x70] sm:$0xff]
        %v250 = vld [vmem:[#allocation5 + $0x78] sm:$0xff]
        %251 = vmatprep.subr.mxu0 0.0
        %v252 = vand.u32 %v250, 4294901760
        %253 = vmatpush1.msra.mxu0 %v252
        %254 = vmatprep.subr.mxu0 0.0
        %v255 = vand.u32 %v249, 4294901760
        %256 = vmatpush1.msra.mxu0 %v255
        %257 = vmatprep.subr.mxu0 0.0
        %v258 = vand.u32 %v248, 4294901760
        %259 = vmatpush1.msra.mxu0 %v258
        %260 = vmatprep.subr.mxu0 0.0
        %v261 = vand.u32 %v247, 4294901760
        %262 = vmatpush1.msra.mxu0 %v261
        %263 = vmatprep.subr.mxu0 0.0
        %v264 = vand.u32 %v246, 4294901760
        %265 = vmatpush1.msra.mxu0 %v264
        %266 = vmatprep.subr.mxu0 0.0
        %v267 = vand.u32 %v245, 4294901760
        %268 = vmatpush1.msra.mxu0 %v267
        %269 = vmatprep.subr.mxu0 0.0
        %v270 = vand.u32 %v244, 4294901760
        %271 = vmatpush1.msra.mxu0 %v270
        %272 = vmatprep.subr.mxu0 0.0
        %v273 = vand.u32 %v243, 4294901760
        %274 = vmatpush1.msra.mxu0 %v273
        %275 = vmatprep.subr.mxu0 0.0
        %v276 = vand.u32 %v242, 4294901760
        %277 = vmatpush1.msra.mxu0 %v276
        %278 = vmatprep.subr.mxu0 0.0
        %v279 = vand.u32 %v241, 4294901760
        %280 = vmatpush1.msra.mxu0 %v279
        %281 = vmatprep.subr.mxu0 0.0
        %v282 = vand.u32 %v240, 4294901760
        %283 = vmatpush1.msra.mxu0 %v282
        %284 = vmatprep.subr.mxu0 0.0
        %v285 = vand.u32 %v239, 4294901760
        %286 = vmatpush1.msra.mxu0 %v285
        %287 = vmatprep.subr.mxu0 0.0
        %v288 = vand.u32 %v238, 4294901760
        %289 = vmatpush1.msra.mxu0 %v288
        %290 = vmatprep.subr.mxu0 0.0
        %v291 = vand.u32 %v237, 4294901760
        %292 = vmatpush1.msra.mxu0 %v291
        %293 = vmatprep.subr.mxu0 0.0
        %v294 = vand.u32 %v236, 4294901760
        %295 = vmatpush1.msra.mxu0 %v294
        %296 = vmatprep.subr.mxu0 0.0
        %v297 = vand.u32 %v235, 4294901760
        %298 = vmatpush1.msra.mxu0 %v297
        %299 = vmatprep.subr.mxu0 0.0
        %300 = vmatpush2.msra.mxu0 0.0
        %301 = vmatprep.subr.mxu0 0.0
        %302 = vmatpush2.msra.mxu0 0.0
        %303 = vmatprep.subr.mxu0 0.0
        %304 = vmatpush2.msra.mxu0 0.0
        %305 = vmatprep.subr.mxu0 0.0
        %306 = vmatpush2.msra.mxu0 0.0
        %307 = vmatprep.subr.mxu0 0.0
        %308 = vmatpush2.msra.mxu0 0.0
        %309 = vmatprep.subr.mxu0 0.0
        %310 = vmatpush2.msra.mxu0 0.0
        %311 = vmatprep.subr.mxu0 0.0
        %312 = vmatpush2.msra.mxu0 0.0
        %313 = vmatprep.subr.mxu0 0.0
        %314 = vmatpush2.msra.mxu0 0.0
        %315 = vmatprep.subr.mxu0 0.0
        %316 = vmatpush2.msra.mxu0 0.0
        %317 = vmatprep.subr.mxu0 0.0
        %318 = vmatpush2.msra.mxu0 0.0
        %319 = vmatprep.subr.mxu0 0.0
        %320 = vmatpush2.msra.mxu0 0.0
        %321 = vmatprep.subr.mxu0 0.0
        %322 = vmatpush2.msra.mxu0 0.0
        %323 = vmatprep.subr.mxu0 0.0
        %324 = vmatpush2.msra.mxu0 0.0
        %325 = vmatprep.subr.mxu0 0.0
        %326 = vmatpush2.msra.mxu0 0.0
        %327 = vmatprep.subr.mxu0 0.0
        %328 = vmatpush2.msra.mxu0 0.0
        %329 = vmatprep.subr.mxu0 0.0
        %330 = vmatpush2.msra.mxu0 0.0
        %331 = vmatprep.mubr.f32.mxu0 0.0
        %v332 = vand.u32 %v233, 4294901760
        %v333 = vsub.f32 %v233, %v332
        %v334 = vand.u32 %v333, 4294901760
        %v335 = vsub.f32 %v333, %v334
        %v336 = vand.u32 %v335, 4294901760
        %337 = vmatmul.mubr.f32.gmra.mxu0 %v336
        %v338 = vpop.f32.mrf.mxu0
        %v339 = vadd.f32 0.0, %v338
        %v340 = vpop.f32.mrf.mxu0
        %341 = vmatprep.mubr.f32.mxu0 0.0
        %v342 = vand.u32 %v234, 4294901760
        %v343 = vsub.f32 %v234, %v342
        %v344 = vand.u32 %v343, 4294901760
        %v345 = vsub.f32 %v343, %v344
        %v346 = vand.u32 %v345, 4294901760
        %347 = vmatmul.mubr.f32.gmra.mxu0 %v346
        %v348 = vpop.f32.mrf.mxu0
        %v349 = vadd.f32 0.0, %v348
        %v350 = vpop.f32.mrf.mxu0
        %351 = vdwg.mxu0
        %352 = vmatprep.subr.mxu0 0.0
        %v353 = vand.u32 %v250, 4294901760
        %v354 = vsub.f32 %v250, %v353
        %v355 = vand.u32 %v354, 4294901760
        %v356 = vsub.f32 %v354, %v355
        %v357 = vand.u32 %v356, 4294901760
        %358 = vmatpush1.msra.mxu0 %v357
        %359 = vmatprep.subr.mxu0 0.0
        %v360 = vand.u32 %v249, 4294901760
        %v361 = vsub.f32 %v249, %v360
        %v362 = vand.u32 %v361, 4294901760
        %v363 = vsub.f32 %v361, %v362
        %v364 = vand.u32 %v363, 4294901760
        %365 = vmatpush1.msra.mxu0 %v364
        %366 = vmatprep.subr.mxu0 0.0
        %v367 = vand.u32 %v248, 4294901760
        %v368 = vsub.f32 %v248, %v367
        %v369 = vand.u32 %v368, 4294901760
        %v370 = vsub.f32 %v368, %v369
        %v371 = vand.u32 %v370, 4294901760
        %372 = vmatpush1.msra.mxu0 %v371
        %373 = vmatprep.subr.mxu0 0.0
        %v374 = vand.u32 %v247, 4294901760
        %v375 = vsub.f32 %v247, %v374
        %v376 = vand.u32 %v375, 4294901760
        %v377 = vsub.f32 %v375, %v376
        %v378 = vand.u32 %v377, 4294901760
        %379 = vmatpush1.msra.mxu0 %v378
        %380 = vmatprep.subr.mxu0 0.0
        %v381 = vand.u32 %v246, 4294901760
        %v382 = vsub.f32 %v246, %v381
        %v383 = vand.u32 %v382, 4294901760
        %v384 = vsub.f32 %v382, %v383
        %v385 = vand.u32 %v384, 4294901760
        %386 = vmatpush1.msra.mxu0 %v385
        %387 = vmatprep.subr.mxu0 0.0
        %v388 = vand.u32 %v245, 4294901760
        %v389 = vsub.f32 %v245, %v388
        %v390 = vand.u32 %v389, 4294901760
        %v391 = vsub.f32 %v389, %v390
        %v392 = vand.u32 %v391, 4294901760
        %393 = vmatpush1.msra.mxu0 %v392
        %394 = vmatprep.subr.mxu0 0.0
        %v395 = vand.u32 %v244, 4294901760
        %v396 = vsub.f32 %v244, %v395
        %v397 = vand.u32 %v396, 4294901760
        %v398 = vsub.f32 %v396, %v397
        %v399 = vand.u32 %v398, 4294901760
        %400 = vmatpush1.msra.mxu0 %v399
        %401 = vmatprep.subr.mxu0 0.0
        %v402 = vand.u32 %v243, 4294901760
        %v403 = vsub.f32 %v243, %v402
        %v404 = vand.u32 %v403, 4294901760
        %v405 = vsub.f32 %v403, %v404
        %v406 = vand.u32 %v405, 4294901760
        %407 = vmatpush1.msra.mxu0 %v406
        %408 = vmatprep.subr.mxu0 0.0
        %v409 = vand.u32 %v242, 4294901760
        %v410 = vsub.f32 %v242, %v409
        %v411 = vand.u32 %v410, 4294901760
        %v412 = vsub.f32 %v410, %v411
        %v413 = vand.u32 %v412, 4294901760
        %414 = vmatpush1.msra.mxu0 %v413
        %415 = vmatprep.subr.mxu0 0.0
        %v416 = vand.u32 %v241, 4294901760
        %v417 = vsub.f32 %v241, %v416
        %v418 = vand.u32 %v417, 4294901760
        %v419 = vsub.f32 %v417, %v418
        %v420 = vand.u32 %v419, 4294901760
        %421 = vmatpush1.msra.mxu0 %v420
        %422 = vmatprep.subr.mxu0 0.0
        %v423 = vand.u32 %v240, 4294901760
        %v424 = vsub.f32 %v240, %v423
        %v425 = vand.u32 %v424, 4294901760
        %v426 = vsub.f32 %v424, %v425
        %v427 = vand.u32 %v426, 4294901760
        %428 = vmatpush1.msra.mxu0 %v427
        %429 = vmatprep.subr.mxu0 0.0
        %v430 = vand.u32 %v239, 4294901760
        %v431 = vsub.f32 %v239, %v430
        %v432 = vand.u32 %v431, 4294901760
        %v433 = vsub.f32 %v431, %v432
        %v434 = vand.u32 %v433, 4294901760
        %435 = vmatpush1.msra.mxu0 %v434
        %436 = vmatprep.subr.mxu0 0.0
        %v437 = vand.u32 %v238, 4294901760
        %v438 = vsub.f32 %v238, %v437
        %v439 = vand.u32 %v438, 4294901760
        %v440 = vsub.f32 %v438, %v439
        %v441 = vand.u32 %v440, 4294901760
        %442 = vmatpush1.msra.mxu0 %v441
        %443 = vmatprep.subr.mxu0 0.0
        %v444 = vand.u32 %v237, 4294901760
        %v445 = vsub.f32 %v237, %v444
        %v446 = vand.u32 %v445, 4294901760
        %v447 = vsub.f32 %v445, %v446
        %v448 = vand.u32 %v447, 4294901760
        %449 = vmatpush1.msra.mxu0 %v448
        %450 = vmatprep.subr.mxu0 0.0
        %v451 = vand.u32 %v236, 4294901760
        %v452 = vsub.f32 %v236, %v451
        %v453 = vand.u32 %v452, 4294901760
        %v454 = vsub.f32 %v452, %v453
        %v455 = vand.u32 %v454, 4294901760
        %456 = vmatpush1.msra.mxu0 %v455
        %457 = vmatprep.subr.mxu0 0.0
        %v458 = vand.u32 %v235, 4294901760
        %v459 = vsub.f32 %v235, %v458
        %v460 = vand.u32 %v459, 4294901760
        %v461 = vsub.f32 %v459, %v460
        %v462 = vand.u32 %v461, 4294901760
        %463 = vmatpush1.msra.mxu0 %v462
        %464 = vmatprep.subr.mxu0 0.0
        %465 = vmatpush2.msra.mxu0 0.0
        %466 = vmatprep.subr.mxu0 0.0
        %467 = vmatpush2.msra.mxu0 0.0
        %468 = vmatprep.subr.mxu0 0.0
        %469 = vmatpush2.msra.mxu0 0.0
        %470 = vmatprep.subr.mxu0 0.0
        %471 = vmatpush2.msra.mxu0 0.0
        %472 = vmatprep.subr.mxu0 0.0
        %473 = vmatpush2.msra.mxu0 0.0
        %474 = vmatprep.subr.mxu0 0.0
        %475 = vmatpush2.msra.mxu0 0.0
        %476 = vmatprep.subr.mxu0 0.0
        %477 = vmatpush2.msra.mxu0 0.0
        %478 = vmatprep.subr.mxu0 0.0
        %479 = vmatpush2.msra.mxu0 0.0
        %480 = vmatprep.subr.mxu0 0.0
        %481 = vmatpush2.msra.mxu0 0.0
        %482 = vmatprep.subr.mxu0 0.0
        %483 = vmatpush2.msra.mxu0 0.0
        %484 = vmatprep.subr.mxu0 0.0
        %485 = vmatpush2.msra.mxu0 0.0
        %486 = vmatprep.subr.mxu0 0.0
        %487 = vmatpush2.msra.mxu0 0.0
        %488 = vmatprep.subr.mxu0 0.0
        %489 = vmatpush2.msra.mxu0 0.0
        %490 = vmatprep.subr.mxu0 0.0
        %491 = vmatpush2.msra.mxu0 0.0
        %492 = vmatprep.subr.mxu0 0.0
        %493 = vmatpush2.msra.mxu0 0.0
        %494 = vmatprep.subr.mxu0 0.0
        %495 = vmatpush2.msra.mxu0 0.0
        %496 = vmatprep.mubr.f32.mxu0 0.0
        %v497 = vand.u32 %v233, 4294901760
        %498 = vmatmul.mubr.f32.gmra.mxu0 %v497
        %v499 = vpop.f32.mrf.mxu0
        %v500 = vadd.f32 %v339, %v499
        %v501 = vpop.f32.mrf.mxu0
        %502 = vmatprep.mubr.f32.mxu0 0.0
        %v503 = vand.u32 %v234, 4294901760
        %504 = vmatmul.mubr.f32.gmra.mxu0 %v503
        %v505 = vpop.f32.mrf.mxu0
        %v506 = vadd.f32 %v349, %v505
        %v507 = vpop.f32.mrf.mxu0
        %508 = vdwg.mxu0
        %509 = vmatprep.subr.mxu0 0.0
        %v510 = vand.u32 %v250, 4294901760
        %v511 = vsub.f32 %v250, %v510
        %512 = vmatpush1.msra.mxu0 %v511
        %513 = vmatprep.subr.mxu0 0.0
        %v514 = vand.u32 %v249, 4294901760
        %v515 = vsub.f32 %v249, %v514
        %516 = vmatpush1.msra.mxu0 %v515
        %517 = vmatprep.subr.mxu0 0.0
        %v518 = vand.u32 %v248, 4294901760
        %v519 = vsub.f32 %v248, %v518
        %520 = vmatpush1.msra.mxu0 %v519
        %521 = vmatprep.subr.mxu0 0.0
        %v522 = vand.u32 %v247, 4294901760
        %v523 = vsub.f32 %v247, %v522
        %524 = vmatpush1.msra.mxu0 %v523
        %525 = vmatprep.subr.mxu0 0.0
        %v526 = vand.u32 %v246, 4294901760
        %v527 = vsub.f32 %v246, %v526
        %528 = vmatpush1.msra.mxu0 %v527
        %529 = vmatprep.subr.mxu0 0.0
        %v530 = vand.u32 %v245, 4294901760
        %v531 = vsub.f32 %v245, %v530
        %532 = vmatpush1.msra.mxu0 %v531
        %533 = vmatprep.subr.mxu0 0.0
        %v534 = vand.u32 %v244, 4294901760
        %v535 = vsub.f32 %v244, %v534
        %536 = vmatpush1.msra.mxu0 %v535
        %537 = vmatprep.subr.mxu0 0.0
        %v538 = vand.u32 %v243, 4294901760
        %v539 = vsub.f32 %v243, %v538
        %540 = vmatpush1.msra.mxu0 %v539
        %541 = vmatprep.subr.mxu0 0.0
        %v542 = vand.u32 %v242, 4294901760
        %v543 = vsub.f32 %v242, %v542
        %544 = vmatpush1.msra.mxu0 %v543
        %545 = vmatprep.subr.mxu0 0.0
        %v546 = vand.u32 %v241, 4294901760
        %v547 = vsub.f32 %v241, %v546
        %548 = vmatpush1.msra.mxu0 %v547
        %549 = vmatprep.subr.mxu0 0.0
        %v550 = vand.u32 %v240, 4294901760
        %v551 = vsub.f32 %v240, %v550
        %552 = vmatpush1.msra.mxu0 %v551
        %553 = vmatprep.subr.mxu0 0.0
        %v554 = vand.u32 %v239, 4294901760
        %v555 = vsub.f32 %v239, %v554
        %556 = vmatpush1.msra.mxu0 %v555
        %557 = vmatprep.subr.mxu0 0.0
        %v558 = vand.u32 %v238, 4294901760
        %v559 = vsub.f32 %v238, %v558
        %560 = vmatpush1.msra.mxu0 %v559
        %561 = vmatprep.subr.mxu0 0.0
        %v562 = vand.u32 %v237, 4294901760
        %v563 = vsub.f32 %v237, %v562
        %564 = vmatpush1.msra.mxu0 %v563
        %565 = vmatprep.subr.mxu0 0.0
        %v566 = vand.u32 %v236, 4294901760
        %v567 = vsub.f32 %v236, %v566
        %568 = vmatpush1.msra.mxu0 %v567
        %569 = vmatprep.subr.mxu0 0.0
        %v570 = vand.u32 %v235, 4294901760
        %v571 = vsub.f32 %v235, %v570
        %572 = vmatpush1.msra.mxu0 %v571
        %573 = vmatprep.subr.mxu0 0.0
        %574 = vmatpush2.msra.mxu0 0.0
        %575 = vmatprep.subr.mxu0 0.0
        %576 = vmatpush2.msra.mxu0 0.0
        %577 = vmatprep.subr.mxu0 0.0
        %578 = vmatpush2.msra.mxu0 0.0
        %579 = vmatprep.subr.mxu0 0.0
        %580 = vmatpush2.msra.mxu0 0.0
        %581 = vmatprep.subr.mxu0 0.0
        %582 = vmatpush2.msra.mxu0 0.0
        %583 = vmatprep.subr.mxu0 0.0
        %584 = vmatpush2.msra.mxu0 0.0
        %585 = vmatprep.subr.mxu0 0.0
        %586 = vmatpush2.msra.mxu0 0.0
        %587 = vmatprep.subr.mxu0 0.0
        %588 = vmatpush2.msra.mxu0 0.0
        %589 = vmatprep.subr.mxu0 0.0
        %590 = vmatpush2.msra.mxu0 0.0
        %591 = vmatprep.subr.mxu0 0.0
        %592 = vmatpush2.msra.mxu0 0.0
        %593 = vmatprep.subr.mxu0 0.0
        %594 = vmatpush2.msra.mxu0 0.0
        %595 = vmatprep.subr.mxu0 0.0
        %596 = vmatpush2.msra.mxu0 0.0
        %597 = vmatprep.subr.mxu0 0.0
        %598 = vmatpush2.msra.mxu0 0.0
        %599 = vmatprep.subr.mxu0 0.0
        %600 = vmatpush2.msra.mxu0 0.0
        %601 = vmatprep.subr.mxu0 0.0
        %602 = vmatpush2.msra.mxu0 0.0
        %603 = vmatprep.subr.mxu0 0.0
        %604 = vmatpush2.msra.mxu0 0.0
        %605 = vmatprep.mubr.f32.mxu0 0.0
        %v606 = vand.u32 %v233, 4294901760
        %v607 = vsub.f32 %v233, %v606
        %608 = vmatmul.mubr.f32.gmra.mxu0 %v607
        %v609 = vpop.f32.mrf.mxu0
        %v610 = vadd.f32 %v500, %v609
        %v611 = vpop.f32.mrf.mxu0
        %612 = vmatprep.mubr.f32.mxu0 0.0
        %v613 = vand.u32 %v234, 4294901760
        %v614 = vsub.f32 %v234, %v613
        %615 = vmatmul.mubr.f32.gmra.mxu0 %v614
        %v616 = vpop.f32.mrf.mxu0
        %v617 = vadd.f32 %v506, %v616
        %v618 = vpop.f32.mrf.mxu0
        %619 = vdwg.mxu0
        %620 = vmatprep.subr.mxu0 0.0
        %v621 = vand.u32 %v250, 4294901760
        %622 = vmatpush1.msra.mxu0 %v621
        %623 = vmatprep.subr.mxu0 0.0
        %v624 = vand.u32 %v249, 4294901760
        %625 = vmatpush1.msra.mxu0 %v624
        %626 = vmatprep.subr.mxu0 0.0
        %v627 = vand.u32 %v248, 4294901760
        %628 = vmatpush1.msra.mxu0 %v627
        %629 = vmatprep.subr.mxu0 0.0
        %v630 = vand.u32 %v247, 4294901760
        %631 = vmatpush1.msra.mxu0 %v630
        %632 = vmatprep.subr.mxu0 0.0
        %v633 = vand.u32 %v246, 4294901760
        %634 = vmatpush1.msra.mxu0 %v633
        %635 = vmatprep.subr.mxu0 0.0
        %v636 = vand.u32 %v245, 4294901760
        %637 = vmatpush1.msra.mxu0 %v636
        %638 = vmatprep.subr.mxu0 0.0
        %v639 = vand.u32 %v244, 4294901760
        %640 = vmatpush1.msra.mxu0 %v639
        %641 = vmatprep.subr.mxu0 0.0
        %v642 = vand.u32 %v243, 4294901760
        %643 = vmatpush1.msra.mxu0 %v642
        %644 = vmatprep.subr.mxu0 0.0
        %v645 = vand.u32 %v242, 4294901760
        %646 = vmatpush1.msra.mxu0 %v645
        %647 = vmatprep.subr.mxu0 0.0
        %v648 = vand.u32 %v241, 4294901760
        %649 = vmatpush1.msra.mxu0 %v648
        %650 = vmatprep.subr.mxu0 0.0
        %v651 = vand.u32 %v240, 4294901760
        %652 = vmatpush1.msra.mxu0 %v651
        %653 = vmatprep.subr.mxu0 0.0
        %v654 = vand.u32 %v239, 4294901760
        %655 = vmatpush1.msra.mxu0 %v654
        %656 = vmatprep.subr.mxu0 0.0
        %v657 = vand.u32 %v238, 4294901760
        %658 = vmatpush1.msra.mxu0 %v657
        %659 = vmatprep.subr.mxu0 0.0
        %v660 = vand.u32 %v237, 4294901760
        %661 = vmatpush1.msra.mxu0 %v660
        %662 = vmatprep.subr.mxu0 0.0
        %v663 = vand.u32 %v236, 4294901760
        %664 = vmatpush1.msra.mxu0 %v663
        %665 = vmatprep.subr.mxu0 0.0
        %v666 = vand.u32 %v235, 4294901760
        %667 = vmatpush1.msra.mxu0 %v666
        %668 = vmatprep.subr.mxu0 0.0
        %669 = vmatpush2.msra.mxu0 0.0
        %670 = vmatprep.subr.mxu0 0.0
        %671 = vmatpush2.msra.mxu0 0.0
        %672 = vmatprep.subr.mxu0 0.0
        %673 = vmatpush2.msra.mxu0 0.0
        %674 = vmatprep.subr.mxu0 0.0
        %675 = vmatpush2.msra.mxu0 0.0
        %676 = vmatprep.subr.mxu0 0.0
        %677 = vmatpush2.msra.mxu0 0.0
        %678 = vmatprep.subr.mxu0 0.0
        %679 = vmatpush2.msra.mxu0 0.0
        %680 = vmatprep.subr.mxu0 0.0
        %681 = vmatpush2.msra.mxu0 0.0
        %682 = vmatprep.subr.mxu0 0.0
        %683 = vmatpush2.msra.mxu0 0.0
        %684 = vmatprep.subr.mxu0 0.0
        %685 = vmatpush2.msra.mxu0 0.0
        %686 = vmatprep.subr.mxu0 0.0
        %687 = vmatpush2.msra.mxu0 0.0
        %688 = vmatprep.subr.mxu0 0.0
        %689 = vmatpush2.msra.mxu0 0.0
        %690 = vmatprep.subr.mxu0 0.0
        %691 = vmatpush2.msra.mxu0 0.0
        %692 = vmatprep.subr.mxu0 0.0
        %693 = vmatpush2.msra.mxu0 0.0
        %694 = vmatprep.subr.mxu0 0.0
        %695 = vmatpush2.msra.mxu0 0.0
        %696 = vmatprep.subr.mxu0 0.0
        %697 = vmatpush2.msra.mxu0 0.0
        %698 = vmatprep.subr.mxu0 0.0
        %699 = vmatpush2.msra.mxu0 0.0
        %700 = vmatprep.mubr.f32.mxu0 0.0
        %v701 = vand.u32 %v233, 4294901760
        %v702 = vsub.f32 %v233, %v701
        %v703 = vand.u32 %v702, 4294901760
        %704 = vmatmul.mubr.f32.gmra.mxu0 %v703
        %v705 = vpop.f32.mrf.mxu0
        %v706 = vadd.f32 %v610, %v705
        %v707 = vpop.f32.mrf.mxu0
        %708 = vmatprep.mubr.f32.mxu0 0.0
        %v709 = vand.u32 %v234, 4294901760
        %v710 = vsub.f32 %v234, %v709
        %v711 = vand.u32 %v710, 4294901760
        %712 = vmatmul.mubr.f32.gmra.mxu0 %v711
        %v713 = vpop.f32.mrf.mxu0
        %v714 = vadd.f32 %v617, %v713
        %v715 = vpop.f32.mrf.mxu0
        %716 = vdwg.mxu0
        %717 = vmatprep.subr.mxu0 0.0
        %v718 = vand.u32 %v250, 4294901760
        %v719 = vsub.f32 %v250, %v718
        %v720 = vand.u32 %v719, 4294901760
        %721 = vmatpush1.msra.mxu0 %v720
        %722 = vmatprep.subr.mxu0 0.0
        %v723 = vand.u32 %v249, 4294901760
        %v724 = vsub.f32 %v249, %v723
        %v725 = vand.u32 %v724, 4294901760
        %726 = vmatpush1.msra.mxu0 %v725
        %727 = vmatprep.subr.mxu0 0.0
        %v728 = vand.u32 %v248, 4294901760
        %v729 = vsub.f32 %v248, %v728
        %v730 = vand.u32 %v729, 4294901760
        %731 = vmatpush1.msra.mxu0 %v730
        %732 = vmatprep.subr.mxu0 0.0
        %v733 = vand.u32 %v247, 4294901760
        %v734 = vsub.f32 %v247, %v733
        %v735 = vand.u32 %v734, 4294901760
        %736 = vmatpush1.msra.mxu0 %v735
        %737 = vmatprep.subr.mxu0 0.0
        %v738 = vand.u32 %v246, 4294901760
        %v739 = vsub.f32 %v246, %v738
        %v740 = vand.u32 %v739, 4294901760
        %741 = vmatpush1.msra.mxu0 %v740
        %742 = vmatprep.subr.mxu0 0.0
        %v743 = vand.u32 %v245, 4294901760
        %v744 = vsub.f32 %v245, %v743
        %v745 = vand.u32 %v744, 4294901760
        %746 = vmatpush1.msra.mxu0 %v745
        %747 = vmatprep.subr.mxu0 0.0
        %v748 = vand.u32 %v244, 4294901760
        %v749 = vsub.f32 %v244, %v748
        %v750 = vand.u32 %v749, 4294901760
        %751 = vmatpush1.msra.mxu0 %v750
        %752 = vmatprep.subr.mxu0 0.0
        %v753 = vand.u32 %v243, 4294901760
        %v754 = vsub.f32 %v243, %v753
        %v755 = vand.u32 %v754, 4294901760
        %756 = vmatpush1.msra.mxu0 %v755
        %757 = vmatprep.subr.mxu0 0.0
        %v758 = vand.u32 %v242, 4294901760
        %v759 = vsub.f32 %v242, %v758
        %v760 = vand.u32 %v759, 4294901760
        %761 = vmatpush1.msra.mxu0 %v760
        %762 = vmatprep.subr.mxu0 0.0
        %v763 = vand.u32 %v241, 4294901760
        %v764 = vsub.f32 %v241, %v763
        %v765 = vand.u32 %v764, 4294901760
        %766 = vmatpush1.msra.mxu0 %v765
        %767 = vmatprep.subr.mxu0 0.0
        %v768 = vand.u32 %v240, 4294901760
        %v769 = vsub.f32 %v240, %v768
        %v770 = vand.u32 %v769, 4294901760
        %771 = vmatpush1.msra.mxu0 %v770
        %772 = vmatprep.subr.mxu0 0.0
        %v773 = vand.u32 %v239, 4294901760
        %v774 = vsub.f32 %v239, %v773
        %v775 = vand.u32 %v774, 4294901760
        %776 = vmatpush1.msra.mxu0 %v775
        %777 = vmatprep.subr.mxu0 0.0
        %v778 = vand.u32 %v238, 4294901760
        %v779 = vsub.f32 %v238, %v778
        %v780 = vand.u32 %v779, 4294901760
        %781 = vmatpush1.msra.mxu0 %v780
        %782 = vmatprep.subr.mxu0 0.0
        %v783 = vand.u32 %v237, 4294901760
        %v784 = vsub.f32 %v237, %v783
        %v785 = vand.u32 %v784, 4294901760
        %786 = vmatpush1.msra.mxu0 %v785
        %787 = vmatprep.subr.mxu0 0.0
        %v788 = vand.u32 %v236, 4294901760
        %v789 = vsub.f32 %v236, %v788
        %v790 = vand.u32 %v789, 4294901760
        %791 = vmatpush1.msra.mxu0 %v790
        %792 = vmatprep.subr.mxu0 0.0
        %v793 = vand.u32 %v235, 4294901760
        %v794 = vsub.f32 %v235, %v793
        %v795 = vand.u32 %v794, 4294901760
        %796 = vmatpush1.msra.mxu0 %v795
        %797 = vmatprep.subr.mxu0 0.0
        %798 = vmatpush2.msra.mxu0 0.0
        %799 = vmatprep.subr.mxu0 0.0
        %800 = vmatpush2.msra.mxu0 0.0
        %801 = vmatprep.subr.mxu0 0.0
        %802 = vmatpush2.msra.mxu0 0.0
        %803 = vmatprep.subr.mxu0 0.0
        %804 = vmatpush2.msra.mxu0 0.0
        %805 = vmatprep.subr.mxu0 0.0
        %806 = vmatpush2.msra.mxu0 0.0
        %807 = vmatprep.subr.mxu0 0.0
        %808 = vmatpush2.msra.mxu0 0.0
        %809 = vmatprep.subr.mxu0 0.0
        %810 = vmatpush2.msra.mxu0 0.0
        %811 = vmatprep.subr.mxu0 0.0
        %812 = vmatpush2.msra.mxu0 0.0
        %813 = vmatprep.subr.mxu0 0.0
        %814 = vmatpush2.msra.mxu0 0.0
        %815 = vmatprep.subr.mxu0 0.0
        %816 = vmatpush2.msra.mxu0 0.0
        %817 = vmatprep.subr.mxu0 0.0
        %818 = vmatpush2.msra.mxu0 0.0
        %819 = vmatprep.subr.mxu0 0.0
        %820 = vmatpush2.msra.mxu0 0.0
        %821 = vmatprep.subr.mxu0 0.0
        %822 = vmatpush2.msra.mxu0 0.0
        %823 = vmatprep.subr.mxu0 0.0
        %824 = vmatpush2.msra.mxu0 0.0
        %825 = vmatprep.subr.mxu0 0.0
        %826 = vmatpush2.msra.mxu0 0.0
        %827 = vmatprep.subr.mxu0 0.0
        %828 = vmatpush2.msra.mxu0 0.0
        %829 = vmatprep.mubr.f32.mxu0 0.0
        %v830 = vand.u32 %v233, 4294901760
        %831 = vmatmul.mubr.f32.gmra.mxu0 %v830
        %v832 = vpop.f32.mrf.mxu0
        %v833 = vadd.f32 %v706, %v832
        %v834 = vpop.f32.mrf.mxu0
        %835 = vmatprep.mubr.f32.mxu0 0.0
        %v836 = vand.u32 %v234, 4294901760
        %837 = vmatmul.mubr.f32.gmra.mxu0 %v836
        %v838 = vpop.f32.mrf.mxu0
        %v839 = vadd.f32 %v714, %v838
        %v840 = vpop.f32.mrf.mxu0
        %841 = vdwg.mxu0
        %842 = vmatprep.subr.mxu0 0.0
        %v843 = vand.u32 %v250, 4294901760
        %844 = vmatpush1.msra.mxu0 %v843
        %845 = vmatprep.subr.mxu0 0.0
        %v846 = vand.u32 %v249, 4294901760
        %847 = vmatpush1.msra.mxu0 %v846
        %848 = vmatprep.subr.mxu0 0.0
        %v849 = vand.u32 %v248, 4294901760
        %850 = vmatpush1.msra.mxu0 %v849
        %851 = vmatprep.subr.mxu0 0.0
        %v852 = vand.u32 %v247, 4294901760
        %853 = vmatpush1.msra.mxu0 %v852
        %854 = vmatprep.subr.mxu0 0.0
        %v855 = vand.u32 %v246, 4294901760
        %856 = vmatpush1.msra.mxu0 %v855
        %857 = vmatprep.subr.mxu0 0.0
        %v858 = vand.u32 %v245, 4294901760
        %859 = vmatpush1.msra.mxu0 %v858
        %860 = vmatprep.subr.mxu0 0.0
        %v861 = vand.u32 %v244, 4294901760
        %862 = vmatpush1.msra.mxu0 %v861
        %863 = vmatprep.subr.mxu0 0.0
        %v864 = vand.u32 %v243, 4294901760
        %865 = vmatpush1.msra.mxu0 %v864
        %866 = vmatprep.subr.mxu0 0.0
        %v867 = vand.u32 %v242, 4294901760
        %868 = vmatpush1.msra.mxu0 %v867
        %869 = vmatprep.subr.mxu0 0.0
        %v870 = vand.u32 %v241, 4294901760
        %871 = vmatpush1.msra.mxu0 %v870
        %872 = vmatprep.subr.mxu0 0.0
        %v873 = vand.u32 %v240, 4294901760
        %874 = vmatpush1.msra.mxu0 %v873
        %875 = vmatprep.subr.mxu0 0.0
        %v876 = vand.u32 %v239, 4294901760
        %877 = vmatpush1.msra.mxu0 %v876
        %878 = vmatprep.subr.mxu0 0.0
        %v879 = vand.u32 %v238, 4294901760
        %880 = vmatpush1.msra.mxu0 %v879
        %881 = vmatprep.subr.mxu0 0.0
        %v882 = vand.u32 %v237, 4294901760
        %883 = vmatpush1.msra.mxu0 %v882
        %884 = vmatprep.subr.mxu0 0.0
        %v885 = vand.u32 %v236, 4294901760
        %886 = vmatpush1.msra.mxu0 %v885
        %887 = vmatprep.subr.mxu0 0.0
        %v888 = vand.u32 %v235, 4294901760
        %889 = vmatpush1.msra.mxu0 %v888
        %890 = vmatprep.subr.mxu0 0.0
        %891 = vmatpush2.msra.mxu0 0.0
        %892 = vmatprep.subr.mxu0 0.0
        %893 = vmatpush2.msra.mxu0 0.0
        %894 = vmatprep.subr.mxu0 0.0
        %895 = vmatpush2.msra.mxu0 0.0
        %896 = vmatprep.subr.mxu0 0.0
        %897 = vmatpush2.msra.mxu0 0.0
        %898 = vmatprep.subr.mxu0 0.0
        %899 = vmatpush2.msra.mxu0 0.0
        %900 = vmatprep.subr.mxu0 0.0
        %901 = vmatpush2.msra.mxu0 0.0
        %902 = vmatprep.subr.mxu0 0.0
        %903 = vmatpush2.msra.mxu0 0.0
        %904 = vmatprep.subr.mxu0 0.0
        %905 = vmatpush2.msra.mxu0 0.0
        %906 = vmatprep.subr.mxu0 0.0
        %907 = vmatpush2.msra.mxu0 0.0
        %908 = vmatprep.subr.mxu0 0.0
        %909 = vmatpush2.msra.mxu0 0.0
        %910 = vmatprep.subr.mxu0 0.0
        %911 = vmatpush2.msra.mxu0 0.0
        %912 = vmatprep.subr.mxu0 0.0
        %913 = vmatpush2.msra.mxu0 0.0
        %914 = vmatprep.subr.mxu0 0.0
        %915 = vmatpush2.msra.mxu0 0.0
        %916 = vmatprep.subr.mxu0 0.0
        %917 = vmatpush2.msra.mxu0 0.0
        %918 = vmatprep.subr.mxu0 0.0
        %919 = vmatpush2.msra.mxu0 0.0
        %920 = vmatprep.subr.mxu0 0.0
        %921 = vmatpush2.msra.mxu0 0.0
        %922 = vmatprep.mubr.f32.mxu0 0.0
        %v923 = vand.u32 %v233, 4294901760
        %924 = vmatmul.mubr.f32.gmra.mxu0 %v923
        %v925 = vpop.f32.mrf.mxu0
        %v926 = vadd.f32 %v833, %v925
        %v927 = vpop.f32.mrf.mxu0
        %928 = vmatprep.mubr.f32.mxu0 0.0
        %v929 = vand.u32 %v234, 4294901760
        %930 = vmatmul.mubr.f32.gmra.mxu0 %v929
        %v931 = vpop.f32.mrf.mxu0
        %v932 = vadd.f32 %v839, %v931
        %v933 = vpop.f32.mrf.mxu0
        %934 = vdwg.mxu0
        %v935 = vmul.f32 %v926, 0.03125
        %v936 = vmul.f32 %v932, 0.03125
        %v937 = vsub.f32 %v233, %v935
        %v938 = vsub.f32 %v234, %v936
        %v939 = vmul.f32 %v937, %v937
        %v940 = vmul.f32 %v938, %v938
        %941 = vmatprep.subr.mxu0 0.0
        %v942 = vand.u32 %v250, 4294901760
        %943 = vmatpush1.msra.mxu0 %v942
        %944 = vmatprep.subr.mxu0 0.0
        %v945 = vand.u32 %v249, 4294901760
        %946 = vmatpush1.msra.mxu0 %v945
        %947 = vmatprep.subr.mxu0 0.0
        %v948 = vand.u32 %v248, 4294901760
        %949 = vmatpush1.msra.mxu0 %v948
        %950 = vmatprep.subr.mxu0 0.0
        %v951 = vand.u32 %v247, 4294901760
        %952 = vmatpush1.msra.mxu0 %v951
        %953 = vmatprep.subr.mxu0 0.0
        %v954 = vand.u32 %v246, 4294901760
        %955 = vmatpush1.msra.mxu0 %v954
        %956 = vmatprep.subr.mxu0 0.0
        %v957 = vand.u32 %v245, 4294901760
        %958 = vmatpush1.msra.mxu0 %v957
        %959 = vmatprep.subr.mxu0 0.0
        %v960 = vand.u32 %v244, 4294901760
        %961 = vmatpush1.msra.mxu0 %v960
        %962 = vmatprep.subr.mxu0 0.0
        %v963 = vand.u32 %v243, 4294901760
        %964 = vmatpush1.msra.mxu0 %v963
        %965 = vmatprep.subr.mxu0 0.0
        %v966 = vand.u32 %v242, 4294901760
        %967 = vmatpush1.msra.mxu0 %v966
        %968 = vmatprep.subr.mxu0 0.0
        %v969 = vand.u32 %v241, 4294901760
        %970 = vmatpush1.msra.mxu0 %v969
        %971 = vmatprep.subr.mxu0 0.0
        %v972 = vand.u32 %v240, 4294901760
        %973 = vmatpush1.msra.mxu0 %v972
        %974 = vmatprep.subr.mxu0 0.0
        %v975 = vand.u32 %v239, 4294901760
        %976 = vmatpush1.msra.mxu0 %v975
        %977 = vmatprep.subr.mxu0 0.0
        %v978 = vand.u32 %v238, 4294901760
        %979 = vmatpush1.msra.mxu0 %v978
        %980 = vmatprep.subr.mxu0 0.0
        %v981 = vand.u32 %v237, 4294901760
        %982 = vmatpush1.msra.mxu0 %v981
        %983 = vmatprep.subr.mxu0 0.0
        %v984 = vand.u32 %v236, 4294901760
        %985 = vmatpush1.msra.mxu0 %v984
        %986 = vmatprep.subr.mxu0 0.0
        %v987 = vand.u32 %v235, 4294901760
        %988 = vmatpush1.msra.mxu0 %v987
        %989 = vmatprep.subr.mxu0 0.0
        %990 = vmatpush2.msra.mxu0 0.0
        %991 = vmatprep.subr.mxu0 0.0
        %992 = vmatpush2.msra.mxu0 0.0
        %993 = vmatprep.subr.mxu0 0.0
        %994 = vmatpush2.msra.mxu0 0.0
        %995 = vmatprep.subr.mxu0 0.0
        %996 = vmatpush2.msra.mxu0 0.0
        %997 = vmatprep.subr.mxu0 0.0
        %998 = vmatpush2.msra.mxu0 0.0
        %999 = vmatprep.subr.mxu0 0.0
        %1000 = vmatpush2.msra.mxu0 0.0
        %1001 = vmatprep.subr.mxu0 0.0
        %1002 = vmatpush2.msra.mxu0 0.0
        %1003 = vmatprep.subr.mxu0 0.0
        %1004 = vmatpush2.msra.mxu0 0.0
        %1005 = vmatprep.subr.mxu0 0.0
        %1006 = vmatpush2.msra.mxu0 0.0
        %1007 = vmatprep.subr.mxu0 0.0
        %1008 = vmatpush2.msra.mxu0 0.0
        %1009 = vmatprep.subr.mxu0 0.0
        %1010 = vmatpush2.msra.mxu0 0.0
        %1011 = vmatprep.subr.mxu0 0.0
        %1012 = vmatpush2.msra.mxu0 0.0
        %1013 = vmatprep.subr.mxu0 0.0
        %1014 = vmatpush2.msra.mxu0 0.0
        %1015 = vmatprep.subr.mxu0 0.0
        %1016 = vmatpush2.msra.mxu0 0.0
        %1017 = vmatprep.subr.mxu0 0.0
        %1018 = vmatpush2.msra.mxu0 0.0
        %1019 = vmatprep.subr.mxu0 0.0
        %1020 = vmatpush2.msra.mxu0 0.0
        %1021 = vmatprep.mubr.f32.mxu0 0.0
        %v1022 = vand.u32 %v939, 4294901760
        %v1023 = vsub.f32 %v939, %v1022
        %v1024 = vand.u32 %v1023, 4294901760
        %v1025 = vsub.f32 %v1023, %v1024
        %v1026 = vand.u32 %v1025, 4294901760
        %1027 = vmatmul.mubr.f32.gmra.mxu0 %v1026
        %v1028 = vpop.f32.mrf.mxu0
        %v1029 = vadd.f32 0.0, %v1028
        %v1030 = vpop.f32.mrf.mxu0
        %1031 = vmatprep.mubr.f32.mxu0 0.0
        %v1032 = vand.u32 %v940, 4294901760
        %v1033 = vsub.f32 %v940, %v1032
        %v1034 = vand.u32 %v1033, 4294901760
        %v1035 = vsub.f32 %v1033, %v1034
        %v1036 = vand.u32 %v1035, 4294901760
        %1037 = vmatmul.mubr.f32.gmra.mxu0 %v1036
        %v1038 = vpop.f32.mrf.mxu0
        %v1039 = vadd.f32 0.0, %v1038
        %v1040 = vpop.f32.mrf.mxu0
        %1041 = vdwg.mxu0
        %1042 = vmatprep.subr.mxu0 0.0
        %v1043 = vand.u32 %v250, 4294901760
        %v1044 = vsub.f32 %v250, %v1043
        %v1045 = vand.u32 %v1044, 4294901760
        %v1046 = vsub.f32 %v1044, %v1045
        %v1047 = vand.u32 %v1046, 4294901760
        %1048 = vmatpush1.msra.mxu0 %v1047
        %1049 = vmatprep.subr.mxu0 0.0
        %v1050 = vand.u32 %v249, 4294901760
        %v1051 = vsub.f32 %v249, %v1050
        %v1052 = vand.u32 %v1051, 4294901760
        %v1053 = vsub.f32 %v1051, %v1052
        %v1054 = vand.u32 %v1053, 4294901760
        %1055 = vmatpush1.msra.mxu0 %v1054
        %1056 = vmatprep.subr.mxu0 0.0
        %v1057 = vand.u32 %v248, 4294901760
        %v1058 = vsub.f32 %v248, %v1057
        %v1059 = vand.u32 %v1058, 4294901760
        %v1060 = vsub.f32 %v1058, %v1059
        %v1061 = vand.u32 %v1060, 4294901760
        %1062 = vmatpush1.msra.mxu0 %v1061
        %1063 = vmatprep.subr.mxu0 0.0
        %v1064 = vand.u32 %v247, 4294901760
        %v1065 = vsub.f32 %v247, %v1064
        %v1066 = vand.u32 %v1065, 4294901760
        %v1067 = vsub.f32 %v1065, %v1066
        %v1068 = vand.u32 %v1067, 4294901760
        %1069 = vmatpush1.msra.mxu0 %v1068
        %1070 = vmatprep.subr.mxu0 0.0
        %v1071 = vand.u32 %v246, 4294901760
        %v1072 = vsub.f32 %v246, %v1071
        %v1073 = vand.u32 %v1072, 4294901760
        %v1074 = vsub.f32 %v1072, %v1073
        %v1075 = vand.u32 %v1074, 4294901760
        %1076 = vmatpush1.msra.mxu0 %v1075
        %1077 = vmatprep.subr.mxu0 0.0
        %v1078 = vand.u32 %v245, 4294901760
        %v1079 = vsub.f32 %v245, %v1078
        %v1080 = vand.u32 %v1079, 4294901760
        %v1081 = vsub.f32 %v1079, %v1080
        %v1082 = vand.u32 %v1081, 4294901760
        %1083 = vmatpush1.msra.mxu0 %v1082
        %1084 = vmatprep.subr.mxu0 0.0
        %v1085 = vand.u32 %v244, 4294901760
        %v1086 = vsub.f32 %v244, %v1085
        %v1087 = vand.u32 %v1086, 4294901760
        %v1088 = vsub.f32 %v1086, %v1087
        %v1089 = vand.u32 %v1088, 4294901760
        %1090 = vmatpush1.msra.mxu0 %v1089
        %1091 = vmatprep.subr.mxu0 0.0
        %v1092 = vand.u32 %v243, 4294901760
        %v1093 = vsub.f32 %v243, %v1092
        %v1094 = vand.u32 %v1093, 4294901760
        %v1095 = vsub.f32 %v1093, %v1094
        %v1096 = vand.u32 %v1095, 4294901760
        %1097 = vmatpush1.msra.mxu0 %v1096
        %1098 = vmatprep.subr.mxu0 0.0
        %v1099 = vand.u32 %v242, 4294901760
        %v1100 = vsub.f32 %v242, %v1099
        %v1101 = vand.u32 %v1100, 4294901760
        %v1102 = vsub.f32 %v1100, %v1101
        %v1103 = vand.u32 %v1102, 4294901760
        %1104 = vmatpush1.msra.mxu0 %v1103
        %1105 = vmatprep.subr.mxu0 0.0
        %v1106 = vand.u32 %v241, 4294901760
        %v1107 = vsub.f32 %v241, %v1106
        %v1108 = vand.u32 %v1107, 4294901760
        %v1109 = vsub.f32 %v1107, %v1108
        %v1110 = vand.u32 %v1109, 4294901760
        %1111 = vmatpush1.msra.mxu0 %v1110
        %1112 = vmatprep.subr.mxu0 0.0
        %v1113 = vand.u32 %v240, 4294901760
        %v1114 = vsub.f32 %v240, %v1113
        %v1115 = vand.u32 %v1114, 4294901760
        %v1116 = vsub.f32 %v1114, %v1115
        %v1117 = vand.u32 %v1116, 4294901760
        %1118 = vmatpush1.msra.mxu0 %v1117
        %1119 = vmatprep.subr.mxu0 0.0
        %v1120 = vand.u32 %v239, 4294901760
        %v1121 = vsub.f32 %v239, %v1120
        %v1122 = vand.u32 %v1121, 4294901760
        %v1123 = vsub.f32 %v1121, %v1122
        %v1124 = vand.u32 %v1123, 4294901760
        %1125 = vmatpush1.msra.mxu0 %v1124
        %1126 = vmatprep.subr.mxu0 0.0
        %v1127 = vand.u32 %v238, 4294901760
        %v1128 = vsub.f32 %v238, %v1127
        %v1129 = vand.u32 %v1128, 4294901760
        %v1130 = vsub.f32 %v1128, %v1129
        %v1131 = vand.u32 %v1130, 4294901760
        %1132 = vmatpush1.msra.mxu0 %v1131
        %1133 = vmatprep.subr.mxu0 0.0
        %v1134 = vand.u32 %v237, 4294901760
        %v1135 = vsub.f32 %v237, %v1134
        %v1136 = vand.u32 %v1135, 4294901760
        %v1137 = vsub.f32 %v1135, %v1136
        %v1138 = vand.u32 %v1137, 4294901760
        %1139 = vmatpush1.msra.mxu0 %v1138
        %1140 = vmatprep.subr.mxu0 0.0
        %v1141 = vand.u32 %v236, 4294901760
        %v1142 = vsub.f32 %v236, %v1141
        %v1143 = vand.u32 %v1142, 4294901760
        %v1144 = vsub.f32 %v1142, %v1143
        %v1145 = vand.u32 %v1144, 4294901760
        %1146 = vmatpush1.msra.mxu0 %v1145
        %1147 = vmatprep.subr.mxu0 0.0
        %v1148 = vand.u32 %v235, 4294901760
        %v1149 = vsub.f32 %v235, %v1148
        %v1150 = vand.u32 %v1149, 4294901760
        %v1151 = vsub.f32 %v1149, %v1150
        %v1152 = vand.u32 %v1151, 4294901760
        %1153 = vmatpush1.msra.mxu0 %v1152
        %1154 = vmatprep.subr.mxu0 0.0
        %1155 = vmatpush2.msra.mxu0 0.0
        %1156 = vmatprep.subr.mxu0 0.0
        %1157 = vmatpush2.msra.mxu0 0.0
        %1158 = vmatprep.subr.mxu0 0.0
        %1159 = vmatpush2.msra.mxu0 0.0
        %1160 = vmatprep.subr.mxu0 0.0
        %1161 = vmatpush2.msra.mxu0 0.0
        %1162 = vmatprep.subr.mxu0 0.0
        %1163 = vmatpush2.msra.mxu0 0.0
        %1164 = vmatprep.subr.mxu0 0.0
        %1165 = vmatpush2.msra.mxu0 0.0
        %1166 = vmatprep.subr.mxu0 0.0
        %1167 = vmatpush2.msra.mxu0 0.0
        %1168 = vmatprep.subr.mxu0 0.0
        %1169 = vmatpush2.msra.mxu0 0.0
        %1170 = vmatprep.subr.mxu0 0.0
        %1171 = vmatpush2.msra.mxu0 0.0
        %1172 = vmatprep.subr.mxu0 0.0
        %1173 = vmatpush2.msra.mxu0 0.0
        %1174 = vmatprep.subr.mxu0 0.0
        %1175 = vmatpush2.msra.mxu0 0.0
        %1176 = vmatprep.subr.mxu0 0.0
        %1177 = vmatpush2.msra.mxu0 0.0
        %1178 = vmatprep.subr.mxu0 0.0
        %1179 = vmatpush2.msra.mxu0 0.0
        %1180 = vmatprep.subr.mxu0 0.0
        %1181 = vmatpush2.msra.mxu0 0.0
        %1182 = vmatprep.subr.mxu0 0.0
        %1183 = vmatpush2.msra.mxu0 0.0
        %1184 = vmatprep.subr.mxu0 0.0
        %1185 = vmatpush2.msra.mxu0 0.0
        %1186 = vmatprep.mubr.f32.mxu0 0.0
        %v1187 = vand.u32 %v939, 4294901760
        %1188 = vmatmul.mubr.f32.gmra.mxu0 %v1187
        %v1189 = vpop.f32.mrf.mxu0
        %v1190 = vadd.f32 %v1029, %v1189
        %v1191 = vpop.f32.mrf.mxu0
        %1192 = vmatprep.mubr.f32.mxu0 0.0
        %v1193 = vand.u32 %v940, 4294901760
        %1194 = vmatmul.mubr.f32.gmra.mxu0 %v1193
        %v1195 = vpop.f32.mrf.mxu0
        %v1196 = vadd.f32 %v1039, %v1195
        %v1197 = vpop.f32.mrf.mxu0
        %1198 = vdwg.mxu0
        %1199 = vmatprep.subr.mxu0 0.0
        %v1200 = vand.u32 %v250, 4294901760
        %v1201 = vsub.f32 %v250, %v1200
        %1202 = vmatpush1.msra.mxu0 %v1201
        %1203 = vmatprep.subr.mxu0 0.0
        %v1204 = vand.u32 %v249, 4294901760
        %v1205 = vsub.f32 %v249, %v1204
        %1206 = vmatpush1.msra.mxu0 %v1205
        %1207 = vmatprep.subr.mxu0 0.0
        %v1208 = vand.u32 %v248, 4294901760
        %v1209 = vsub.f32 %v248, %v1208
        %1210 = vmatpush1.msra.mxu0 %v1209
        %1211 = vmatprep.subr.mxu0 0.0
        %v1212 = vand.u32 %v247, 4294901760
        %v1213 = vsub.f32 %v247, %v1212
        %1214 = vmatpush1.msra.mxu0 %v1213
        %1215 = vmatprep.subr.mxu0 0.0
        %v1216 = vand.u32 %v246, 4294901760
        %v1217 = vsub.f32 %v246, %v1216
        %1218 = vmatpush1.msra.mxu0 %v1217
        %1219 = vmatprep.subr.mxu0 0.0
        %v1220 = vand.u32 %v245, 4294901760
        %v1221 = vsub.f32 %v245, %v1220
        %1222 = vmatpush1.msra.mxu0 %v1221
        %1223 = vmatprep.subr.mxu0 0.0
        %v1224 = vand.u32 %v244, 4294901760
        %v1225 = vsub.f32 %v244, %v1224
        %1226 = vmatpush1.msra.mxu0 %v1225
        %1227 = vmatprep.subr.mxu0 0.0
        %v1228 = vand.u32 %v243, 4294901760
        %v1229 = vsub.f32 %v243, %v1228
        %1230 = vmatpush1.msra.mxu0 %v1229
        %1231 = vmatprep.subr.mxu0 0.0
        %v1232 = vand.u32 %v242, 4294901760
        %v1233 = vsub.f32 %v242, %v1232
        %1234 = vmatpush1.msra.mxu0 %v1233
        %1235 = vmatprep.subr.mxu0 0.0
        %v1236 = vand.u32 %v241, 4294901760
        %v1237 = vsub.f32 %v241, %v1236
        %1238 = vmatpush1.msra.mxu0 %v1237
        %1239 = vmatprep.subr.mxu0 0.0
        %v1240 = vand.u32 %v240, 4294901760
        %v1241 = vsub.f32 %v240, %v1240
        %1242 = vmatpush1.msra.mxu0 %v1241
        %1243 = vmatprep.subr.mxu0 0.0
        %v1244 = vand.u32 %v239, 4294901760
        %v1245 = vsub.f32 %v239, %v1244
        %1246 = vmatpush1.msra.mxu0 %v1245
        %1247 = vmatprep.subr.mxu0 0.0
        %v1248 = vand.u32 %v238, 4294901760
        %v1249 = vsub.f32 %v238, %v1248
        %1250 = vmatpush1.msra.mxu0 %v1249
        %1251 = vmatprep.subr.mxu0 0.0
        %v1252 = vand.u32 %v237, 4294901760
        %v1253 = vsub.f32 %v237, %v1252
        %1254 = vmatpush1.msra.mxu0 %v1253
        %1255 = vmatprep.subr.mxu0 0.0
        %v1256 = vand.u32 %v236, 4294901760
        %v1257 = vsub.f32 %v236, %v1256
        %1258 = vmatpush1.msra.mxu0 %v1257
        %1259 = vmatprep.subr.mxu0 0.0
        %v1260 = vand.u32 %v235, 4294901760
        %v1261 = vsub.f32 %v235, %v1260
        %1262 = vmatpush1.msra.mxu0 %v1261
        %1263 = vmatprep.subr.mxu0 0.0
        %1264 = vmatpush2.msra.mxu0 0.0
        %1265 = vmatprep.subr.mxu0 0.0
        %1266 = vmatpush2.msra.mxu0 0.0
        %1267 = vmatprep.subr.mxu0 0.0
        %1268 = vmatpush2.msra.mxu0 0.0
        %1269 = vmatprep.subr.mxu0 0.0
        %1270 = vmatpush2.msra.mxu0 0.0
        %1271 = vmatprep.subr.mxu0 0.0
        %1272 = vmatpush2.msra.mxu0 0.0
        %1273 = vmatprep.subr.mxu0 0.0
        %1274 = vmatpush2.msra.mxu0 0.0
        %1275 = vmatprep.subr.mxu0 0.0
        %1276 = vmatpush2.msra.mxu0 0.0
        %1277 = vmatprep.subr.mxu0 0.0
        %1278 = vmatpush2.msra.mxu0 0.0
        %1279 = vmatprep.subr.mxu0 0.0
        %1280 = vmatpush2.msra.mxu0 0.0
        %1281 = vmatprep.subr.mxu0 0.0
        %1282 = vmatpush2.msra.mxu0 0.0
        %1283 = vmatprep.subr.mxu0 0.0
        %1284 = vmatpush2.msra.mxu0 0.0
        %1285 = vmatprep.subr.mxu0 0.0
        %1286 = vmatpush2.msra.mxu0 0.0
        %1287 = vmatprep.subr.mxu0 0.0
        %1288 = vmatpush2.msra.mxu0 0.0
        %1289 = vmatprep.subr.mxu0 0.0
        %1290 = vmatpush2.msra.mxu0 0.0
        %1291 = vmatprep.subr.mxu0 0.0
        %1292 = vmatpush2.msra.mxu0 0.0
        %1293 = vmatprep.subr.mxu0 0.0
        %1294 = vmatpush2.msra.mxu0 0.0
        %1295 = vmatprep.mubr.f32.mxu0 0.0
        %v1296 = vand.u32 %v939, 4294901760
        %v1297 = vsub.f32 %v939, %v1296
        %1298 = vmatmul.mubr.f32.gmra.mxu0 %v1297
        %v1299 = vpop.f32.mrf.mxu0
        %v1300 = vadd.f32 %v1190, %v1299
        %v1301 = vpop.f32.mrf.mxu0
        %1302 = vmatprep.mubr.f32.mxu0 0.0
        %v1303 = vand.u32 %v940, 4294901760
        %v1304 = vsub.f32 %v940, %v1303
        %1305 = vmatmul.mubr.f32.gmra.mxu0 %v1304
        %v1306 = vpop.f32.mrf.mxu0
        %v1307 = vadd.f32 %v1196, %v1306
        %v1308 = vpop.f32.mrf.mxu0
        %1309 = vdwg.mxu0
        %1310 = vmatprep.subr.mxu0 0.0
        %v1311 = vand.u32 %v250, 4294901760
        %1312 = vmatpush1.msra.mxu0 %v1311
        %1313 = vmatprep.subr.mxu0 0.0
        %v1314 = vand.u32 %v249, 4294901760
        %1315 = vmatpush1.msra.mxu0 %v1314
        %1316 = vmatprep.subr.mxu0 0.0
        %v1317 = vand.u32 %v248, 4294901760
        %1318 = vmatpush1.msra.mxu0 %v1317
        %1319 = vmatprep.subr.mxu0 0.0
        %v1320 = vand.u32 %v247, 4294901760
        %1321 = vmatpush1.msra.mxu0 %v1320
        %1322 = vmatprep.subr.mxu0 0.0
        %v1323 = vand.u32 %v246, 4294901760
        %1324 = vmatpush1.msra.mxu0 %v1323
        %1325 = vmatprep.subr.mxu0 0.0
        %v1326 = vand.u32 %v245, 4294901760
        %1327 = vmatpush1.msra.mxu0 %v1326
        %1328 = vmatprep.subr.mxu0 0.0
        %v1329 = vand.u32 %v244, 4294901760
        %1330 = vmatpush1.msra.mxu0 %v1329
        %1331 = vmatprep.subr.mxu0 0.0
        %v1332 = vand.u32 %v243, 4294901760
        %1333 = vmatpush1.msra.mxu0 %v1332
        %1334 = vmatprep.subr.mxu0 0.0
        %v1335 = vand.u32 %v242, 4294901760
        %1336 = vmatpush1.msra.mxu0 %v1335
        %1337 = vmatprep.subr.mxu0 0.0
        %v1338 = vand.u32 %v241, 4294901760
        %1339 = vmatpush1.msra.mxu0 %v1338
        %1340 = vmatprep.subr.mxu0 0.0
        %v1341 = vand.u32 %v240, 4294901760
        %1342 = vmatpush1.msra.mxu0 %v1341
        %1343 = vmatprep.subr.mxu0 0.0
        %v1344 = vand.u32 %v239, 4294901760
        %1345 = vmatpush1.msra.mxu0 %v1344
        %1346 = vmatprep.subr.mxu0 0.0
        %v1347 = vand.u32 %v238, 4294901760
        %1348 = vmatpush1.msra.mxu0 %v1347
        %1349 = vmatprep.subr.mxu0 0.0
        %v1350 = vand.u32 %v237, 4294901760
        %1351 = vmatpush1.msra.mxu0 %v1350
        %1352 = vmatprep.subr.mxu0 0.0
        %v1353 = vand.u32 %v236, 4294901760
        %1354 = vmatpush1.msra.mxu0 %v1353
        %1355 = vmatprep.subr.mxu0 0.0
        %v1356 = vand.u32 %v235, 4294901760
        %1357 = vmatpush1.msra.mxu0 %v1356
        %1358 = vmatprep.subr.mxu0 0.0
        %1359 = vmatpush2.msra.mxu0 0.0
        %1360 = vmatprep.subr.mxu0 0.0
        %1361 = vmatpush2.msra.mxu0 0.0
        %1362 = vmatprep.subr.mxu0 0.0
        %1363 = vmatpush2.msra.mxu0 0.0
        %1364 = vmatprep.subr.mxu0 0.0
        %1365 = vmatpush2.msra.mxu0 0.0
        %1366 = vmatprep.subr.mxu0 0.0
        %1367 = vmatpush2.msra.mxu0 0.0
        %1368 = vmatprep.subr.mxu0 0.0
        %1369 = vmatpush2.msra.mxu0 0.0
        %1370 = vmatprep.subr.mxu0 0.0
        %1371 = vmatpush2.msra.mxu0 0.0
        %1372 = vmatprep.subr.mxu0 0.0
        %1373 = vmatpush2.msra.mxu0 0.0
        %1374 = vmatprep.subr.mxu0 0.0
        %1375 = vmatpush2.msra.mxu0 0.0
        %1376 = vmatprep.subr.mxu0 0.0
        %1377 = vmatpush2.msra.mxu0 0.0
        %1378 = vmatprep.subr.mxu0 0.0
        %1379 = vmatpush2.msra.mxu0 0.0
        %1380 = vmatprep.subr.mxu0 0.0
        %1381 = vmatpush2.msra.mxu0 0.0
        %1382 = vmatprep.subr.mxu0 0.0
        %1383 = vmatpush2.msra.mxu0 0.0
        %1384 = vmatprep.subr.mxu0 0.0
        %1385 = vmatpush2.msra.mxu0 0.0
        %1386 = vmatprep.subr.mxu0 0.0
        %1387 = vmatpush2.msra.mxu0 0.0
        %1388 = vmatprep.subr.mxu0 0.0
        %1389 = vmatpush2.msra.mxu0 0.0
        %1390 = vmatprep.mubr.f32.mxu0 0.0
        %v1391 = vand.u32 %v939, 4294901760
        %v1392 = vsub.f32 %v939, %v1391
        %v1393 = vand.u32 %v1392, 4294901760
        %1394 = vmatmul.mubr.f32.gmra.mxu0 %v1393
        %v1395 = vpop.f32.mrf.mxu0
        %v1396 = vadd.f32 %v1300, %v1395
        %v1397 = vpop.f32.mrf.mxu0
        %1398 = vmatprep.mubr.f32.mxu0 0.0
        %v1399 = vand.u32 %v940, 4294901760
        %v1400 = vsub.f32 %v940, %v1399
        %v1401 = vand.u32 %v1400, 4294901760
        %1402 = vmatmul.mubr.f32.gmra.mxu0 %v1401
        %v1403 = vpop.f32.mrf.mxu0
        %v1404 = vadd.f32 %v1307, %v1403
        %v1405 = vpop.f32.mrf.mxu0
        %1406 = vdwg.mxu0
        %1407 = vmatprep.subr.mxu0 0.0
        %v1408 = vand.u32 %v250, 4294901760
        %v1409 = vsub.f32 %v250, %v1408
        %v1410 = vand.u32 %v1409, 4294901760
        %1411 = vmatpush1.msra.mxu0 %v1410
        %1412 = vmatprep.subr.mxu0 0.0
        %v1413 = vand.u32 %v249, 4294901760
        %v1414 = vsub.f32 %v249, %v1413
        %v1415 = vand.u32 %v1414, 4294901760
        %1416 = vmatpush1.msra.mxu0 %v1415
        %1417 = vmatprep.subr.mxu0 0.0
        %v1418 = vand.u32 %v248, 4294901760
        %v1419 = vsub.f32 %v248, %v1418
        %v1420 = vand.u32 %v1419, 4294901760
        %1421 = vmatpush1.msra.mxu0 %v1420
        %1422 = vmatprep.subr.mxu0 0.0
        %v1423 = vand.u32 %v247, 4294901760
        %v1424 = vsub.f32 %v247, %v1423
        %v1425 = vand.u32 %v1424, 4294901760
        %1426 = vmatpush1.msra.mxu0 %v1425
        %1427 = vmatprep.subr.mxu0 0.0
        %v1428 = vand.u32 %v246, 4294901760
        %v1429 = vsub.f32 %v246, %v1428
        %v1430 = vand.u32 %v1429, 4294901760
        %1431 = vmatpush1.msra.mxu0 %v1430
        %1432 = vmatprep.subr.mxu0 0.0
        %v1433 = vand.u32 %v245, 4294901760
        %v1434 = vsub.f32 %v245, %v1433
        %v1435 = vand.u32 %v1434, 4294901760
        %1436 = vmatpush1.msra.mxu0 %v1435
        %1437 = vmatprep.subr.mxu0 0.0
        %v1438 = vand.u32 %v244, 4294901760
        %v1439 = vsub.f32 %v244, %v1438
        %v1440 = vand.u32 %v1439, 4294901760
        %1441 = vmatpush1.msra.mxu0 %v1440
        %1442 = vmatprep.subr.mxu0 0.0
        %v1443 = vand.u32 %v243, 4294901760
        %v1444 = vsub.f32 %v243, %v1443
        %v1445 = vand.u32 %v1444, 4294901760
        %1446 = vmatpush1.msra.mxu0 %v1445
        %1447 = vmatprep.subr.mxu0 0.0
        %v1448 = vand.u32 %v242, 4294901760
        %v1449 = vsub.f32 %v242, %v1448
        %v1450 = vand.u32 %v1449, 4294901760
        %1451 = vmatpush1.msra.mxu0 %v1450
        %1452 = vmatprep.subr.mxu0 0.0
        %v1453 = vand.u32 %v241, 4294901760
        %v1454 = vsub.f32 %v241, %v1453
        %v1455 = vand.u32 %v1454, 4294901760
        %1456 = vmatpush1.msra.mxu0 %v1455
        %1457 = vmatprep.subr.mxu0 0.0
        %v1458 = vand.u32 %v240, 4294901760
        %v1459 = vsub.f32 %v240, %v1458
        %v1460 = vand.u32 %v1459, 4294901760
        %1461 = vmatpush1.msra.mxu0 %v1460
        %1462 = vmatprep.subr.mxu0 0.0
        %v1463 = vand.u32 %v239, 4294901760
        %v1464 = vsub.f32 %v239, %v1463
        %v1465 = vand.u32 %v1464, 4294901760
        %1466 = vmatpush1.msra.mxu0 %v1465
        %1467 = vmatprep.subr.mxu0 0.0
        %v1468 = vand.u32 %v238, 4294901760
        %v1469 = vsub.f32 %v238, %v1468
        %v1470 = vand.u32 %v1469, 4294901760
        %1471 = vmatpush1.msra.mxu0 %v1470
        %1472 = vmatprep.subr.mxu0 0.0
        %v1473 = vand.u32 %v237, 4294901760
        %v1474 = vsub.f32 %v237, %v1473
        %v1475 = vand.u32 %v1474, 4294901760
        %1476 = vmatpush1.msra.mxu0 %v1475
        %1477 = vmatprep.subr.mxu0 0.0
        %v1478 = vand.u32 %v236, 4294901760
        %v1479 = vsub.f32 %v236, %v1478
        %v1480 = vand.u32 %v1479, 4294901760
        %1481 = vmatpush1.msra.mxu0 %v1480
        %1482 = vmatprep.subr.mxu0 0.0
        %v1483 = vand.u32 %v235, 4294901760
        %v1484 = vsub.f32 %v235, %v1483
        %v1485 = vand.u32 %v1484, 4294901760
        %1486 = vmatpush1.msra.mxu0 %v1485
        %1487 = vmatprep.subr.mxu0 0.0
        %1488 = vmatpush2.msra.mxu0 0.0
        %1489 = vmatprep.subr.mxu0 0.0
        %1490 = vmatpush2.msra.mxu0 0.0
        %1491 = vmatprep.subr.mxu0 0.0
        %1492 = vmatpush2.msra.mxu0 0.0
        %1493 = vmatprep.subr.mxu0 0.0
        %1494 = vmatpush2.msra.mxu0 0.0
        %1495 = vmatprep.subr.mxu0 0.0
        %1496 = vmatpush2.msra.mxu0 0.0
        %1497 = vmatprep.subr.mxu0 0.0
        %1498 = vmatpush2.msra.mxu0 0.0
        %1499 = vmatprep.subr.mxu0 0.0
        %1500 = vmatpush2.msra.mxu0 0.0
        %1501 = vmatprep.subr.mxu0 0.0
        %1502 = vmatpush2.msra.mxu0 0.0
        %1503 = vmatprep.subr.mxu0 0.0
        %1504 = vmatpush2.msra.mxu0 0.0
        %1505 = vmatprep.subr.mxu0 0.0
        %1506 = vmatpush2.msra.mxu0 0.0
        %1507 = vmatprep.subr.mxu0 0.0
        %1508 = vmatpush2.msra.mxu0 0.0
        %1509 = vmatprep.subr.mxu0 0.0
        %1510 = vmatpush2.msra.mxu0 0.0
        %1511 = vmatprep.subr.mxu0 0.0
        %1512 = vmatpush2.msra.mxu0 0.0
        %1513 = vmatprep.subr.mxu0 0.0
        %1514 = vmatpush2.msra.mxu0 0.0
        %1515 = vmatprep.subr.mxu0 0.0
        %1516 = vmatpush2.msra.mxu0 0.0
        %1517 = vmatprep.subr.mxu0 0.0
        %1518 = vmatpush2.msra.mxu0 0.0
        %1519 = vmatprep.mubr.f32.mxu0 0.0
        %v1520 = vand.u32 %v939, 4294901760
        %1521 = vmatmul.mubr.f32.gmra.mxu0 %v1520
        %v1522 = vpop.f32.mrf.mxu0
        %v1523 = vadd.f32 %v1396, %v1522
        %v1524 = vpop.f32.mrf.mxu0
        %1525 = vmatprep.mubr.f32.mxu0 0.0
        %v1526 = vand.u32 %v940, 4294901760
        %1527 = vmatmul.mubr.f32.gmra.mxu0 %v1526
        %v1528 = vpop.f32.mrf.mxu0
        %v1529 = vadd.f32 %v1404, %v1528
        %v1530 = vpop.f32.mrf.mxu0
        %1531 = vdwg.mxu0
        %1532 = vmatprep.subr.mxu0 0.0
        %v1533 = vand.u32 %v250, 4294901760
        %1534 = vmatpush1.msra.mxu0 %v1533
        %1535 = vmatprep.subr.mxu0 0.0
        %v1536 = vand.u32 %v249, 4294901760
        %1537 = vmatpush1.msra.mxu0 %v1536
        %1538 = vmatprep.subr.mxu0 0.0
        %v1539 = vand.u32 %v248, 4294901760
        %1540 = vmatpush1.msra.mxu0 %v1539
        %1541 = vmatprep.subr.mxu0 0.0
        %v1542 = vand.u32 %v247, 4294901760
        %1543 = vmatpush1.msra.mxu0 %v1542
        %1544 = vmatprep.subr.mxu0 0.0
        %v1545 = vand.u32 %v246, 4294901760
        %1546 = vmatpush1.msra.mxu0 %v1545
        %1547 = vmatprep.subr.mxu0 0.0
        %v1548 = vand.u32 %v245, 4294901760
        %1549 = vmatpush1.msra.mxu0 %v1548
        %1550 = vmatprep.subr.mxu0 0.0
        %v1551 = vand.u32 %v244, 4294901760
        %1552 = vmatpush1.msra.mxu0 %v1551
        %1553 = vmatprep.subr.mxu0 0.0
        %v1554 = vand.u32 %v243, 4294901760
        %1555 = vmatpush1.msra.mxu0 %v1554
        %1556 = vmatprep.subr.mxu0 0.0
        %v1557 = vand.u32 %v242, 4294901760
        %1558 = vmatpush1.msra.mxu0 %v1557
        %1559 = vmatprep.subr.mxu0 0.0
        %v1560 = vand.u32 %v241, 4294901760
        %1561 = vmatpush1.msra.mxu0 %v1560
        %1562 = vmatprep.subr.mxu0 0.0
        %v1563 = vand.u32 %v240, 4294901760
        %1564 = vmatpush1.msra.mxu0 %v1563
        %1565 = vmatprep.subr.mxu0 0.0
        %v1566 = vand.u32 %v239, 4294901760
        %1567 = vmatpush1.msra.mxu0 %v1566
        %1568 = vmatprep.subr.mxu0 0.0
        %v1569 = vand.u32 %v238, 4294901760
        %1570 = vmatpush1.msra.mxu0 %v1569
        %1571 = vmatprep.subr.mxu0 0.0
        %v1572 = vand.u32 %v237, 4294901760
        %1573 = vmatpush1.msra.mxu0 %v1572
        %1574 = vmatprep.subr.mxu0 0.0
        %v1575 = vand.u32 %v236, 4294901760
        %1576 = vmatpush1.msra.mxu0 %v1575
        %1577 = vmatprep.subr.mxu0 0.0
        %v1578 = vand.u32 %v235, 4294901760
        %1579 = vmatpush1.msra.mxu0 %v1578
        %1580 = vmatprep.subr.mxu0 0.0
        %1581 = vmatpush2.msra.mxu0 0.0
        %1582 = vmatprep.subr.mxu0 0.0
        %1583 = vmatpush2.msra.mxu0 0.0
        %1584 = vmatprep.subr.mxu0 0.0
        %1585 = vmatpush2.msra.mxu0 0.0
        %1586 = vmatprep.subr.mxu0 0.0
        %1587 = vmatpush2.msra.mxu0 0.0
        %1588 = vmatprep.subr.mxu0 0.0
        %1589 = vmatpush2.msra.mxu0 0.0
        %1590 = vmatprep.subr.mxu0 0.0
        %1591 = vmatpush2.msra.mxu0 0.0
        %1592 = vmatprep.subr.mxu0 0.0
        %1593 = vmatpush2.msra.mxu0 0.0
        %1594 = vmatprep.subr.mxu0 0.0
        %1595 = vmatpush2.msra.mxu0 0.0
        %1596 = vmatprep.subr.mxu0 0.0
        %1597 = vmatpush2.msra.mxu0 0.0
        %1598 = vmatprep.subr.mxu0 0.0
        %1599 = vmatpush2.msra.mxu0 0.0
        %1600 = vmatprep.subr.mxu0 0.0
        %1601 = vmatpush2.msra.mxu0 0.0
        %1602 = vmatprep.subr.mxu0 0.0
        %1603 = vmatpush2.msra.mxu0 0.0
        %1604 = vmatprep.subr.mxu0 0.0
        %1605 = vmatpush2.msra.mxu0 0.0
        %1606 = vmatprep.subr.mxu0 0.0
        %1607 = vmatpush2.msra.mxu0 0.0
        %1608 = vmatprep.subr.mxu0 0.0
        %1609 = vmatpush2.msra.mxu0 0.0
        %1610 = vmatprep.subr.mxu0 0.0
        %1611 = vmatpush2.msra.mxu0 0.0
        %1612 = vmatprep.mubr.f32.mxu0 0.0
        %v1613 = vand.u32 %v939, 4294901760
        %1614 = vmatmul.mubr.f32.gmra.mxu0 %v1613
        %v1615 = vpop.f32.mrf.mxu0
        %v1616 = vadd.f32 %v1523, %v1615
        %v1617 = vpop.f32.mrf.mxu0
        %1618 = vmatprep.mubr.f32.mxu0 0.0
        %v1619 = vand.u32 %v940, 4294901760
        %1620 = vmatmul.mubr.f32.gmra.mxu0 %v1619
        %v1621 = vpop.f32.mrf.mxu0
        %v1622 = vadd.f32 %v1529, %v1621
        %v1623 = vpop.f32.mrf.mxu0
        %1624 = vdwg.mxu0
        %v1625 = vmul.f32 %v1616, 0.03125
        %v1626 = vmul.f32 %v1622, 0.03125
        %v1627 = vadd.f32 %v1625, 1e-07
        %v1628 = vadd.f32 %v1626, 1e-07
        %v1629 = vrsqrt.pop %v1627
        %v1630 = vrsqrt.pop %v1628
        %v1631 = vmul.f32 %v937, %v1629
        %v1632 = vmul.f32 %v938, %v1630
        %v1633 = vld [vmem:[%s2] sm:$0x1]
        %v1635 = vlaneseq
        %v1636 = vshrl.u32 %v1635, 7
        %v1637 = vsub.s32 0, %v1636
        %v1638 = vrot.slane %v1633, %v1637
        %v1640 = vmul.f32 %v1631, %v1638
        %v1641 = vmul.f32 %v1632, %v1638
        %v1642 = vld [vmem:[%s3] sm:$0x1]
        %v1644 = vlaneseq
        %v1645 = vshrl.u32 %v1644, 7
        %v1646 = vsub.s32 0, %v1645
        %v1647 = vrot.slane %v1642, %v1646
        %v1649 = vadd.f32 %v1640, %v1647
        %v1650 = vadd.f32 %v1641, %v1647
        %1651 = vst [vmem:[%s230] sm:$0xff] %v1649
        %1652 = vst [vmem:[%s230 + $0x8] sm:$0xff] %v1650
        %s1653 = sand.u32 %s119, 1
        %s1654 = scalar_lea.sflag [#allocation4], %s1653
        %s1655 = sand.u32 %s119, 1
        %s1656 = smul.addr %s1655, 16
        %s1657 = scalar_lea.vmem [#allocation7], %s1656
        // Predicated region
        $region45: #{tpu_custom_call.1} parent=35 // pred_check
          %p1658 = pneg %p129
        $region46: #{tpu_custom_call.1} parent=35 // pred_check_branch
          %1660 = sbr.rel (%p1658) target = $region48
        $region47: #{tpu_custom_call.1} parent=35 // pred_region
          %s1661 = smul.u32 2, %s22
          %s1663 = ssub.s32 256, 256
          %1664 = vsyncadd %s1654, %s1663
          %s1665 = smul.addr %s1661, 128
          %s1666 = scalar_lea.hbm %s4, %s1665
          %s1667 = sshll.u32 %s1657, 4
          %s1668 = int_to_ptr.vmem [resolvable:$true] %s1667
          %1673 = dma.vmem_to_hbm [thread:$0]  %s1668, 256, %s1666, %s1654, 128, 128, 8
        $region48: #{tpu_custom_call.1} parent=35 // pred_fallthru
          _
      $region36: #{tpu_custom_call.1} parent=5 // pred_fallthru
        _
      %p1674 = scmp.le.s32.totalorder 2, %s17
      // Predicated region
      $region49: #{tpu_custom_call.1} parent=5 // pred_check
        %p1675 = pneg %p1674
      $region50: #{tpu_custom_call.1} parent=5 // pred_check_branch
        %1677 = sbr.rel (%p1675) target = $region52
      $region51: #{tpu_custom_call.1} parent=5 // pred_region
        %s1678 = ssub.s32 %s17, 2
        // Predicated region
        $region53: #{tpu_custom_call.1} parent=51 // pred_check
          %p1679 = pneg %p135
        $region54: #{tpu_custom_call.1} parent=51 // pred_check_branch
          %1681 = sbr.rel (%p1679) target = $region56
        $region55: #{tpu_custom_call.1} parent=51 // pred_region
          %s1682 = sand.u32 %s120, 1
          %s1683 = scalar_lea.sflag [#allocation4], %s1682
          %s1684 = sand.u32 %s120, 1
          %s1685 = smul.addr %s1684, 16
          %s1686 = scalar_lea.vmem [#allocation7], %s1685
          %1687 = dma.done %s1683, 256
        $region56: #{tpu_custom_call.1} parent=51 // pred_fallthru
          _
      $region52: #{tpu_custom_call.1} parent=5 // pred_fallthru
        _
    $region6: #{tpu_custom_call.1} parent=1 // loop_footer
      %s21 = sadd.s32 1, %s17
    $region7: #{tpu_custom_call.1} parent=1 // loop_footer_branch
      %16 = sbr.rel target = $region3
    $region8: #{tpu_custom_call.1} parent=1 // loop_exit
      _
    %1688 = vsyncpa [#allocation3], 1
    %s1689 = scalar_lea.sflag [#allocation3], 1
    %1690 = vsyncpa %s1689, 1
    %1691 = vsyncpa [#allocation6], 1
    %1692 = vsyncpa [#allocation4], 1
    %s1693 = scalar_lea.sflag [#allocation4], 1
    %1694 = vsyncpa %s1693, 1

</llo_original>
